<compile_context>
chip_gen: v7x
topology: tpu7x:2x2x1
jax: 0.10.0
libtpu: 0.0.40
codegen_flags: <defaults>
</compile_context>

<pallas_src>
import functools

import jax
import jax.numpy as jnp
from jax.experimental import pallas as pl
from jax.experimental.pallas import tpu as pltpu


N_PAD = 128  # lane-dense padding of the scalar value head


def value_kernel(x_ref,
                 w1_ref, b1_ref,
                 w2_ref, b2_ref,
                 w3_ref, b3_ref,
                 w4_ref, b4_ref,
                 out_ref):
    x = x_ref[...]                                     # [TB, n_features] f32

    # ---- fc1 (K = n_features = 2): VPU broadcast FMAs, skip the MXU -------
    h = b1_ref[...] + x[:, 0:1] * w1_ref[0:1, :]       # [TB, 64]
    for k in range(1, x.shape[1]):                     # static unroll (K=2)
        h = h + x[:, k:k + 1] * w1_ref[k:k + 1, :]
    h = jnp.maximum(h, 0.0)

    # ---- fc2 -> relu  (bf16 weights, f32 accumulate) -----------------------
    h = jnp.dot(h.astype(jnp.bfloat16), w2_ref[...],
                preferred_element_type=jnp.float32) + b2_ref[...]
    h = jnp.maximum(h, 0.0)                            # [TB, 128]

    # ---- fc3 -> relu -------------------------------------------------------
    h = jnp.dot(h.astype(jnp.bfloat16), w3_ref[...],
                preferred_element_type=jnp.float32) + b3_ref[...]
    h = jnp.maximum(h, 0.0)                            # [TB, 256]

    # ---- fc4 (value head, padded to 128 lanes; no activation) --------------
    out_ref[...] = jnp.dot(h.astype(jnp.bfloat16), w4_ref[...],
                           preferred_element_type=jnp.float32) + b4_ref[...]


@functools.partial(jax.jit, static_argnames=("tile_b",))
def value_forward(x, params, *, tile_b=256):
    """x: [B, n_features] float32. Returns V(x) of shape [B, 1] float32.

    tile_b: batch tile (256 fills the 2x256^2 MXU on v6e/v7x; use 128 on v5e).
    """
    B, n_features = x.shape
    w1, b1 = params["w1"], params["b1"]
    w2, b2 = params["w2"], params["b2"]
    w3, b3 = params["w3"], params["b3"]
    w4, b4 = params["w4"], params["b4"]

    # bf16 weights for the MXU layers (f32 accumulation inside the kernel).
    w2b = w2.astype(jnp.bfloat16)
    w3b = w3.astype(jnp.bfloat16)

    # Pad the scalar head to 128 output lanes (lane-dense stores, sane MXU N).
    k4 = w4.shape[0]
    w4p = jnp.zeros((k4, N_PAD), jnp.float32).at[:, :1].set(w4).astype(jnp.bfloat16)
    b4p = jnp.zeros((1, N_PAD), jnp.float32).at[:, :1].set(b4)

    # Pad batch to a multiple of the tile.
    n_tiles = pl.cdiv(B, tile_b)
    b_pad = n_tiles * tile_b
    if b_pad != B:
        x = jnp.pad(x, ((0, b_pad - B), (0, 0)))

    const = lambda shape: pl.BlockSpec(shape, lambda i: (0, 0))

    flops = 2 * b_pad * (n_features * 64 + 64 * 128 + 128 * 256 + 256 * N_PAD)
    bytes_accessed = (
        x.size * 4 + b_pad * N_PAD * 4                       # x + padded out
        + w1.size * 4 + w2b.size * 2 + w3b.size * 2 + w4p.size * 2
        + (b1.size + b2.size + b3.size + b4p.size) * 4)

    out = pl.pallas_call(
        value_kernel,
        out_shape=jax.ShapeDtypeStruct((b_pad, N_PAD), jnp.float32),
        grid=(n_tiles,),
        in_specs=[
            pl.BlockSpec((tile_b, n_features), lambda i: (i, 0)),   # x tile
            const(w1.shape), const(b1.shape),
            const(w2b.shape), const(b2.shape),
            const(w3b.shape), const(b3.shape),
            const(w4p.shape), const(b4p.shape),
        ],
        out_specs=pl.BlockSpec((tile_b, N_PAD), lambda i: (i, 0)),
        compiler_params=pltpu.CompilerParams(
            dimension_semantics=("parallel",)),
        cost_estimate=pl.CostEstimate(
            flops=flops, transcendentals=0, bytes_accessed=bytes_accessed),
    )(x, w1, b1, w2b, b2, w3b, b3, w4p, b4p)

    return out[:B, :1]


def reference_forward(x, params):
    """Pure-JAX reference using the same dtype strategy (bf16 MXU layers)."""
    bf = jnp.bfloat16
    h = jnp.maximum(x @ params["w1"] + params["b1"], 0.0)
    h = jnp.maximum(jnp.dot(h.astype(bf), params["w2"].astype(bf),
                            preferred_element_type=jnp.float32) + params["b2"], 0.0)
    h = jnp.maximum(jnp.dot(h.astype(bf), params["w3"].astype(bf),
                            preferred_element_type=jnp.float32) + params["b3"], 0.0)
    return jnp.dot(h.astype(bf), params["w4"].astype(bf),
                   preferred_element_type=jnp.float32) + params["b4"]


def init_params(key, n_features=2):
    """PyTorch nn.Linear-style init (uniform +-1/sqrt(fan_in)).
    Weights stored as [in, out] (transpose of PyTorch's [out, in])."""
    dims = [(n_features, 64), (64, 128), (128, 256), (256, 1)]
    params = {}
    keys = jax.random.split(key, 2 * len(dims))
    for i, (fin, fout) in enumerate(dims):
        bound = 1.0 / (fin ** 0.5)
        params[f"w{i + 1}"] = jax.random.uniform(
            keys[2 * i], (fin, fout), jnp.float32, -bound, bound)
        params[f"b{i + 1}"] = jax.random.uniform(
            keys[2 * i + 1], (1, fout), jnp.float32, -bound, bound)
    return params


if __name__ == "__main__":
    key = jax.random.PRNGKey(0)
    pkey, xkey = jax.random.split(key)

    n_features, batch = 2, 8
    params = init_params(pkey, n_features=n_features)
    x = jax.random.normal(xkey, (batch, n_features), dtype=jnp.float32)

    v = value_forward(x, params)
    jax.block_until_ready(v)

    assert v.shape == (batch, 1), v.shape

    ref = reference_forward(x, params)
    max_err = float(jnp.max(jnp.abs(v - ref)))
    assert max_err < 1e-2, f"mismatch vs reference: max_err={max_err}"

    print("KERNEL_OK")
</pallas_src>

<mosaic_0001>
module attributes {stable_mosaic.version = 11 : i64} {
  func.func @value_kernel(%arg0: i32, %arg1: memref<256x2xf32, #tpu.memory_space<vmem>>, %arg2: memref<2x64xf32, #tpu.memory_space<vmem>>, %arg3: memref<1x64xf32, #tpu.memory_space<vmem>>, %arg4: memref<64x128xbf16, #tpu.memory_space<vmem>>, %arg5: memref<1x128xf32, #tpu.memory_space<vmem>>, %arg6: memref<128x256xbf16, #tpu.memory_space<vmem>>, %arg7: memref<1x256xf32, #tpu.memory_space<vmem>>, %arg8: memref<256x128xbf16, #tpu.memory_space<vmem>>, %arg9: memref<1x128xf32, #tpu.memory_space<vmem>>, %arg10: memref<256x128xf32, #tpu.memory_space<vmem>>) attributes {dimension_semantics = [#tpu.dimension_semantics<parallel>], iteration_bounds = array<i64: 1>, scalar_prefetch = 0 : i64, scratch_operands = 0 : i64, tpu.core_type = #tpu.core_type<tc>, window_params = [{transform_indices = @transform_0, window_bounds = array<i64: 256, 2>}, {pipeline_mode = #tpu.pipeline_mode<synchronous>, transform_indices = @transform_1, window_bounds = array<i64: 2, 64>}, {pipeline_mode = #tpu.pipeline_mode<synchronous>, transform_indices = @transform_2, window_bounds = array<i64: 1, 64>}, {pipeline_mode = #tpu.pipeline_mode<synchronous>, transform_indices = @transform_3, window_bounds = array<i64: 64, 128>}, {pipeline_mode = #tpu.pipeline_mode<synchronous>, transform_indices = @transform_4, window_bounds = array<i64: 1, 128>}, {pipeline_mode = #tpu.pipeline_mode<synchronous>, transform_indices = @transform_5, window_bounds = array<i64: 128, 256>}, {pipeline_mode = #tpu.pipeline_mode<synchronous>, transform_indices = @transform_6, window_bounds = array<i64: 1, 256>}, {pipeline_mode = #tpu.pipeline_mode<synchronous>, transform_indices = @transform_7, window_bounds = array<i64: 256, 128>}, {pipeline_mode = #tpu.pipeline_mode<synchronous>, transform_indices = @transform_8, window_bounds = array<i64: 1, 128>}, {transform_indices = @transform_9, window_bounds = array<i64: 256, 128>}]} {
    %c0 = arith.constant 0 : index
    %c0_0 = arith.constant 0 : index
    %0 = vector.load %arg1[%c0, %c0_0] : memref<256x2xf32, #tpu.memory_space<vmem>>, vector<256x2xf32>
    %c0_1 = arith.constant 0 : index
    %c0_2 = arith.constant 0 : index
    %1 = vector.load %arg3[%c0_1, %c0_2] : memref<1x64xf32, #tpu.memory_space<vmem>>, vector<1x64xf32>
    %2 = vector.extract_strided_slice %0 {offsets = [0, 0], sizes = [256, 1], strides = [1, 1]} : vector<256x2xf32> to vector<256x1xf32>
    %c0_3 = arith.constant 0 : index
    %c0_4 = arith.constant 0 : index
    %3 = vector.load %arg2[%c0_3, %c0_4] : memref<2x64xf32, #tpu.memory_space<vmem>>, vector<1x64xf32>
    %4 = vector.broadcast %2 : vector<256x1xf32> to vector<256x64xf32>
    %5 = vector.broadcast %3 : vector<1x64xf32> to vector<256x64xf32>
    %6 = arith.mulf %4, %5 : vector<256x64xf32>
    %7 = vector.broadcast %1 : vector<1x64xf32> to vector<256x64xf32>
    %8 = arith.addf %7, %6 : vector<256x64xf32>
    %9 = vector.extract_strided_slice %0 {offsets = [0, 1], sizes = [256, 1], strides = [1, 1]} : vector<256x2xf32> to vector<256x1xf32>
    %c1 = arith.constant 1 : index
    %c0_5 = arith.constant 0 : index
    %10 = vector.load %arg2[%c1, %c0_5] : memref<2x64xf32, #tpu.memory_space<vmem>>, vector<1x64xf32>
    %11 = vector.broadcast %9 : vector<256x1xf32> to vector<256x64xf32>
    %12 = vector.broadcast %10 : vector<1x64xf32> to vector<256x64xf32>
    %13 = arith.mulf %11, %12 : vector<256x64xf32>
    %14 = arith.addf %8, %13 : vector<256x64xf32>
    %cst = arith.constant 0.000000e+00 : f32
    %15 = vector.broadcast %cst : f32 to vector<256x64xf32>
    %16 = arith.maximumf %14, %15 : vector<256x64xf32>
    %17 = arith.truncf %16 : vector<256x64xf32> to vector<256x64xbf16>
    %c0_6 = arith.constant 0 : index
    %c0_7 = arith.constant 0 : index
    %18 = vector.load %arg4[%c0_6, %c0_7] : memref<64x128xbf16, #tpu.memory_space<vmem>>, vector<64x128xbf16>
    %cst_8 = arith.constant dense<0.000000e+00> : vector<256x128xf32>
    %19 = tpu.matmul %17, %18, %cst_8 {dimension_numbers = #tpu.dot_dimension_numbers<[1], [0], [0], [1], [0, 0, 1, 1], [], []>} : vector<256x64xbf16>, vector<64x128xbf16>, vector<256x128xf32> -> vector<256x128xf32>
    %c0_9 = arith.constant 0 : index
    %c0_10 = arith.constant 0 : index
    %20 = vector.load %arg5[%c0_9, %c0_10] : memref<1x128xf32, #tpu.memory_space<vmem>>, vector<1x128xf32>
    %21 = vector.broadcast %20 : vector<1x128xf32> to vector<256x128xf32>
    %22 = arith.addf %19, %21 : vector<256x128xf32>
    %cst_11 = arith.constant 0.000000e+00 : f32
    %23 = vector.broadcast %cst_11 : f32 to vector<256x128xf32>
    %24 = arith.maximumf %22, %23 : vector<256x128xf32>
    %25 = arith.truncf %24 : vector<256x128xf32> to vector<256x128xbf16>
    %c0_12 = arith.constant 0 : index
    %c0_13 = arith.constant 0 : index
    %26 = vector.load %arg6[%c0_12, %c0_13] : memref<128x256xbf16, #tpu.memory_space<vmem>>, vector<128x256xbf16>
    %cst_14 = arith.constant dense<0.000000e+00> : vector<256x256xf32>
    %27 = tpu.matmul %25, %26, %cst_14 {dimension_numbers = #tpu.dot_dimension_numbers<[1], [0], [0], [1], [0, 0, 1, 1], [], []>} : vector<256x128xbf16>, vector<128x256xbf16>, vector<256x256xf32> -> vector<256x256xf32>
    %c0_15 = arith.constant 0 : index
    %c0_16 = arith.constant 0 : index
    %28 = vector.load %arg7[%c0_15, %c0_16] : memref<1x256xf32, #tpu.memory_space<vmem>>, vector<1x256xf32>
    %29 = vector.broadcast %28 : vector<1x256xf32> to vector<256x256xf32>
    %30 = arith.addf %27, %29 : vector<256x256xf32>
    %cst_17 = arith.constant 0.000000e+00 : f32
    %31 = vector.broadcast %cst_17 : f32 to vector<256x256xf32>
    %32 = arith.maximumf %30, %31 : vector<256x256xf32>
    %33 = arith.truncf %32 : vector<256x256xf32> to vector<256x256xbf16>
    %c0_18 = arith.constant 0 : index
    %c0_19 = arith.constant 0 : index
    %34 = vector.load %arg8[%c0_18, %c0_19] : memref<256x128xbf16, #tpu.memory_space<vmem>>, vector<256x128xbf16>
    %cst_20 = arith.constant dense<0.000000e+00> : vector<256x128xf32>
    %35 = tpu.matmul %33, %34, %cst_20 {dimension_numbers = #tpu.dot_dimension_numbers<[1], [0], [0], [1], [0, 0, 1, 1], [], []>} : vector<256x256xbf16>, vector<256x128xbf16>, vector<256x128xf32> -> vector<256x128xf32>
    %c0_21 = arith.constant 0 : index
    %c0_22 = arith.constant 0 : index
    %36 = vector.load %arg9[%c0_21, %c0_22] : memref<1x128xf32, #tpu.memory_space<vmem>>, vector<1x128xf32>
    %37 = vector.broadcast %36 : vector<1x128xf32> to vector<256x128xf32>
    %38 = arith.addf %35, %37 : vector<256x128xf32>
    %c0_23 = arith.constant 0 : index
    %c0_24 = arith.constant 0 : index
    %39 = vector.load %arg10[%c0_23, %c0_24] : memref<256x128xf32, #tpu.memory_space<vmem>>, vector<256x128xf32>
    tpu.vector_store %arg10[%c0_23, %c0_24], %38 {strides = array<i32>} : memref<256x128xf32, #tpu.memory_space<vmem>>, vector<256x128xf32>,
    return
  }
  func.func @transform_0(%arg0: i32) -> (i32, i32) {
    %c0_i32 = arith.constant 0 : i32
    %c0_i32_0 = arith.constant 0 : i32
    return %arg0, %c0_i32 : i32, i32
  }
  func.func @transform_1(%arg0: i32) -> (i32, i32) {
    %c0_i32 = arith.constant 0 : i32
    %c0_i32_0 = arith.constant 0 : i32
    %c0_i32_1 = arith.constant 0 : i32
    return %c0_i32, %c0_i32_0 : i32, i32
  }
  func.func @transform_2(%arg0: i32) -> (i32, i32) {
    %c0_i32 = arith.constant 0 : i32
    %c0_i32_0 = arith.constant 0 : i32
    %c0_i32_1 = arith.constant 0 : i32
    return %c0_i32, %c0_i32_0 : i32, i32
  }
  func.func @transform_3(%arg0: i32) -> (i32, i32) {
    %c0_i32 = arith.constant 0 : i32
    %c0_i32_0 = arith.constant 0 : i32
    %c0_i32_1 = arith.constant 0 : i32
    return %c0_i32, %c0_i32_0 : i32, i32
  }
  func.func @transform_4(%arg0: i32) -> (i32, i32) {
    %c0_i32 = arith.constant 0 : i32
    %c0_i32_0 = arith.constant 0 : i32
    %c0_i32_1 = arith.constant 0 : i32
    return %c0_i32, %c0_i32_0 : i32, i32
  }
  func.func @transform_5(%arg0: i32) -> (i32, i32) {
    %c0_i32 = arith.constant 0 : i32
    %c0_i32_0 = arith.constant 0 : i32
    %c0_i32_1 = arith.constant 0 : i32
    return %c0_i32, %c0_i32_0 : i32, i32
  }
  func.func @transform_6(%arg0: i32) -> (i32, i32) {
    %c0_i32 = arith.constant 0 : i32
    %c0_i32_0 = arith.constant 0 : i32
    %c0_i32_1 = arith.constant 0 : i32
    return %c0_i32, %c0_i32_0 : i32, i32
  }
  func.func @transform_7(%arg0: i32) -> (i32, i32) {
    %c0_i32 = arith.constant 0 : i32
    %c0_i32_0 = arith.constant 0 : i32
    %c0_i32_1 = arith.constant 0 : i32
    return %c0_i32, %c0_i32_0 : i32, i32
  }
  func.func @transform_8(%arg0: i32) -> (i32, i32) {
    %c0_i32 = arith.constant 0 : i32
    %c0_i32_0 = arith.constant 0 : i32
    %c0_i32_1 = arith.constant 0 : i32
    return %c0_i32, %c0_i32_0 : i32, i32
  }
  func.func @transform_9(%arg0: i32) -> (i32, i32) {
    %c0_i32 = arith.constant 0 : i32
    %c0_i32_0 = arith.constant 0 : i32
    return %arg0, %c0_i32 : i32, i32
  }
}

</mosaic_0001>

<llo_original>
// kernel: value_forward.1
$region0: #{value_forward.1}
  #allocation0 [shape = 'u32[]', space=smem, size = 0x4, offset = 0x4, fixed_abs, tag = 'smem constant byte address 0x4 - core index']
  #allocation1 [shape = 'u32[144,128]{1,0:T(1,128)}', space=vmem, size = 0x12000, scoped, tag = 'internal scratch']
  %s0 = inlined_call_operand.vmem [shape: f32[256,2], index: 0, kind: input, shape index: {}]
  %s1 = inlined_call_operand.vmem [shape: f32[2,64], index: 1, kind: input, shape index: {}]
  %s2 = inlined_call_operand.vmem [shape: f32[1,64], index: 2, kind: input, shape index: {}]
  %s3 = inlined_call_operand.vmem [shape: bf16[64,128], index: 3, kind: input, shape index: {}]
  %s4 = inlined_call_operand.vmem [shape: f32[1,128], index: 4, kind: input, shape index: {}]
  %s5 = inlined_call_operand.vmem [shape: bf16[128,256], index: 5, kind: input, shape index: {}]
  %s6 = inlined_call_operand.vmem [shape: f32[1,256], index: 6, kind: input, shape index: {}]
  %s7 = inlined_call_operand.vmem [shape: bf16[256,128], index: 7, kind: input, shape index: {}]
  %s8 = inlined_call_operand.vmem [shape: f32[1,128], index: 8, kind: input, shape index: {}]
  %s9 = inlined_call_operand.vmem [shape: f32[256,128], index: 9, kind: output, shape index: {}]
  %s10 = sld [smem:[#allocation0]]
  $region46: #{value_forward.1} parent=0
    _
  %s12 = ssub.s32 1, %s10
  %s13 = scalar_select 0, %s12, %s10
  // Predicated region
  $region2: #{value_forward.1} parent=0 // pred_check
    _
  $region3: #{value_forward.1} parent=0 // pred_check_branch
    %15 = sbr.rel (0) target = $region5
  $region4: #{value_forward.1} parent=0 // pred_region
    _
  $region5: #{value_forward.1} parent=0 // pred_fallthru
    _
  // Predicated region
  $region6: #{value_forward.1} parent=0 // pred_check
    _
  $region7: #{value_forward.1} parent=0 // pred_check_branch
    %17 = sbr.rel (0) target = $region9
  $region8: #{value_forward.1} parent=0 // pred_region
    _
  $region9: #{value_forward.1} parent=0 // pred_fallthru
    _
  // Predicated region
  $region10: #{value_forward.1} parent=0 // pred_check
    _
  $region11: #{value_forward.1} parent=0 // pred_check_branch
    %19 = sbr.rel (0) target = $region13
  $region12: #{value_forward.1} parent=0 // pred_region
    _
  $region13: #{value_forward.1} parent=0 // pred_fallthru
    _
  // Predicated region
  $region14: #{value_forward.1} parent=0 // pred_check
    _
  $region15: #{value_forward.1} parent=0 // pred_check_branch
    %21 = sbr.rel (0) target = $region17
  $region16: #{value_forward.1} parent=0 // pred_region
    _
  $region17: #{value_forward.1} parent=0 // pred_fallthru
    _
  // Predicated region
  $region18: #{value_forward.1} parent=0 // pred_check
    _
  $region19: #{value_forward.1} parent=0 // pred_check_branch
    %23 = sbr.rel (0) target = $region21
  $region20: #{value_forward.1} parent=0 // pred_region
    _
  $region21: #{value_forward.1} parent=0 // pred_fallthru
    _
  // Predicated region
  $region22: #{value_forward.1} parent=0 // pred_check
    _
  $region23: #{value_forward.1} parent=0 // pred_check_branch
    %25 = sbr.rel (0) target = $region25
  $region24: #{value_forward.1} parent=0 // pred_region
    _
  $region25: #{value_forward.1} parent=0 // pred_fallthru
    _
  // Predicated region
  $region26: #{value_forward.1} parent=0 // pred_check
    _
  $region27: #{value_forward.1} parent=0 // pred_check_branch
    %27 = sbr.rel (0) target = $region29
  $region28: #{value_forward.1} parent=0 // pred_region
    _
  $region29: #{value_forward.1} parent=0 // pred_fallthru
    _
  // Predicated region
  $region30: #{value_forward.1} parent=0 // pred_check
    _
  $region31: #{value_forward.1} parent=0 // pred_check_branch
    %29 = sbr.rel (0) target = $region33
  $region32: #{value_forward.1} parent=0 // pred_region
    _
  $region33: #{value_forward.1} parent=0 // pred_fallthru
    _
  // Predicated region
  $region34: #{value_forward.1} parent=0 // pred_check
    _
  $region35: #{value_forward.1} parent=0 // pred_check_branch
    %31 = sbr.rel (0) target = $region37
  $region36: #{value_forward.1} parent=0 // pred_region
    _
  $region37: #{value_forward.1} parent=0 // pred_fallthru
    _
  %v33 = vld [vmem:[%s0] sm:$0xff]
  %v34 = vld [vmem:[%s0 + $0x8] sm:$0xff]
  %v35 = vld [vmem:[%s0 + $0x10] sm:$0xff]
  %v36 = vld [vmem:[%s0 + $0x18] sm:$0xff]
  %v37 = vld [vmem:[%s0 + $0x20] sm:$0xff]
  %v38 = vld [vmem:[%s0 + $0x28] sm:$0xff]
  %v39 = vld [vmem:[%s0 + $0x30] sm:$0xff]
  %v40 = vld [vmem:[%s0 + $0x38] sm:$0xff]
  %v41 = vld [vmem:[%s0 + $0x40] sm:$0xff]
  %v42 = vld [vmem:[%s0 + $0x48] sm:$0xff]
  %v43 = vld [vmem:[%s0 + $0x50] sm:$0xff]
  %v44 = vld [vmem:[%s0 + $0x58] sm:$0xff]
  %v45 = vld [vmem:[%s0 + $0x60] sm:$0xff]
  %v46 = vld [vmem:[%s0 + $0x68] sm:$0xff]
  %v47 = vld [vmem:[%s0 + $0x70] sm:$0xff]
  %v48 = vld [vmem:[%s0 + $0x78] sm:$0xff]
  %v49 = vld [vmem:[%s0 + $0x80] sm:$0xff]
  %v50 = vld [vmem:[%s0 + $0x88] sm:$0xff]
  %v51 = vld [vmem:[%s0 + $0x90] sm:$0xff]
  %v52 = vld [vmem:[%s0 + $0x98] sm:$0xff]
  %v53 = vld [vmem:[%s0 + $0xa0] sm:$0xff]
  %v54 = vld [vmem:[%s0 + $0xa8] sm:$0xff]
  %v55 = vld [vmem:[%s0 + $0xb0] sm:$0xff]
  %v56 = vld [vmem:[%s0 + $0xb8] sm:$0xff]
  %v57 = vld [vmem:[%s0 + $0xc0] sm:$0xff]
  %v58 = vld [vmem:[%s0 + $0xc8] sm:$0xff]
  %v59 = vld [vmem:[%s0 + $0xd0] sm:$0xff]
  %v60 = vld [vmem:[%s0 + $0xd8] sm:$0xff]
  %v61 = vld [vmem:[%s0 + $0xe0] sm:$0xff]
  %v62 = vld [vmem:[%s0 + $0xe8] sm:$0xff]
  %v63 = vld [vmem:[%s0 + $0xf0] sm:$0xff]
  %v64 = vld [vmem:[%s0 + $0xf8] sm:$0xff]
  %v65 = vld [vmem:[%s2] sm:$0x1]
  %v66 = vld [vmem:[%s1] sm:$0x1]
  %68 = vset.pattern.permute.xlu0 0
  %69 = vperm.xlu0 %68, %v33
  %v70 = vpop.permute.xlu0 %69
  %73 = vset.pattern.permute.xlu0 0
  %74 = vperm.xlu0 %73, %v34
  %v75 = vpop.permute.xlu0 %74
  %78 = vset.pattern.permute.xlu0 0
  %79 = vperm.xlu0 %78, %v35
  %v80 = vpop.permute.xlu0 %79
  %83 = vset.pattern.permute.xlu0 0
  %84 = vperm.xlu0 %83, %v36
  %v85 = vpop.permute.xlu0 %84
  %88 = vset.pattern.permute.xlu0 0
  %89 = vperm.xlu0 %88, %v37
  %v90 = vpop.permute.xlu0 %89
  %93 = vset.pattern.permute.xlu0 0
  %94 = vperm.xlu0 %93, %v38
  %v95 = vpop.permute.xlu0 %94
  %98 = vset.pattern.permute.xlu0 0
  %99 = vperm.xlu0 %98, %v39
  %v100 = vpop.permute.xlu0 %99
  %103 = vset.pattern.permute.xlu0 0
  %104 = vperm.xlu0 %103, %v40
  %v105 = vpop.permute.xlu0 %104
  %108 = vset.pattern.permute.xlu0 0
  %109 = vperm.xlu0 %108, %v41
  %v110 = vpop.permute.xlu0 %109
  %113 = vset.pattern.permute.xlu0 0
  %114 = vperm.xlu0 %113, %v42
  %v115 = vpop.permute.xlu0 %114
  %118 = vset.pattern.permute.xlu0 0
  %119 = vperm.xlu0 %118, %v43
  %v120 = vpop.permute.xlu0 %119
  %123 = vset.pattern.permute.xlu0 0
  %124 = vperm.xlu0 %123, %v44
  %v125 = vpop.permute.xlu0 %124
  %128 = vset.pattern.permute.xlu0 0
  %129 = vperm.xlu0 %128, %v45
  %v130 = vpop.permute.xlu0 %129
  %133 = vset.pattern.permute.xlu0 0
  %134 = vperm.xlu0 %133, %v46
  %v135 = vpop.permute.xlu0 %134
  %138 = vset.pattern.permute.xlu0 0
  %139 = vperm.xlu0 %138, %v47
  %v140 = vpop.permute.xlu0 %139
  %143 = vset.pattern.permute.xlu0 0
  %144 = vperm.xlu0 %143, %v48
  %v145 = vpop.permute.xlu0 %144
  %148 = vset.pattern.permute.xlu0 0
  %149 = vperm.xlu0 %148, %v49
  %v150 = vpop.permute.xlu0 %149
  %153 = vset.pattern.permute.xlu0 0
  %154 = vperm.xlu0 %153, %v50
  %v155 = vpop.permute.xlu0 %154
  %158 = vset.pattern.permute.xlu0 0
  %159 = vperm.xlu0 %158, %v51
  %v160 = vpop.permute.xlu0 %159
  %163 = vset.pattern.permute.xlu0 0
  %164 = vperm.xlu0 %163, %v52
  %v165 = vpop.permute.xlu0 %164
  %168 = vset.pattern.permute.xlu0 0
  %169 = vperm.xlu0 %168, %v53
  %v170 = vpop.permute.xlu0 %169
  %173 = vset.pattern.permute.xlu0 0
  %174 = vperm.xlu0 %173, %v54
  %v175 = vpop.permute.xlu0 %174
  %178 = vset.pattern.permute.xlu0 0
  %179 = vperm.xlu0 %178, %v55
  %v180 = vpop.permute.xlu0 %179
  %183 = vset.pattern.permute.xlu0 0
  %184 = vperm.xlu0 %183, %v56
  %v185 = vpop.permute.xlu0 %184
  %188 = vset.pattern.permute.xlu0 0
  %189 = vperm.xlu0 %188, %v57
  %v190 = vpop.permute.xlu0 %189
  %193 = vset.pattern.permute.xlu0 0
  %194 = vperm.xlu0 %193, %v58
  %v195 = vpop.permute.xlu0 %194
  %198 = vset.pattern.permute.xlu0 0
  %199 = vperm.xlu0 %198, %v59
  %v200 = vpop.permute.xlu0 %199
  %203 = vset.pattern.permute.xlu0 0
  %204 = vperm.xlu0 %203, %v60
  %v205 = vpop.permute.xlu0 %204
  %208 = vset.pattern.permute.xlu0 0
  %209 = vperm.xlu0 %208, %v61
  %v210 = vpop.permute.xlu0 %209
  %213 = vset.pattern.permute.xlu0 0
  %214 = vperm.xlu0 %213, %v62
  %v215 = vpop.permute.xlu0 %214
  %218 = vset.pattern.permute.xlu0 0
  %219 = vperm.xlu0 %218, %v63
  %v220 = vpop.permute.xlu0 %219
  %223 = vset.pattern.permute.xlu0 0
  %224 = vperm.xlu0 %223, %v64
  %v225 = vpop.permute.xlu0 %224
  %v227 = vlaneseq
  %v228 = vshrl.u32 %v227, 7
  %v229 = vsub.s32 0, %v228
  %v230 = vrot.slane %v66, %v229
  %v231 = vmul.f32 %v70, %v230
  %v232 = vmul.f32 %v75, %v230
  %v233 = vmul.f32 %v80, %v230
  %v234 = vmul.f32 %v85, %v230
  %v235 = vmul.f32 %v90, %v230
  %v236 = vmul.f32 %v95, %v230
  %v237 = vmul.f32 %v100, %v230
  %v238 = vmul.f32 %v105, %v230
  %v239 = vmul.f32 %v110, %v230
  %v240 = vmul.f32 %v115, %v230
  %v241 = vmul.f32 %v120, %v230
  %v242 = vmul.f32 %v125, %v230
  %v243 = vmul.f32 %v130, %v230
  %v244 = vmul.f32 %v135, %v230
  %v245 = vmul.f32 %v140, %v230
  %v246 = vmul.f32 %v145, %v230
  %v247 = vmul.f32 %v150, %v230
  %v248 = vmul.f32 %v155, %v230
  %v249 = vmul.f32 %v160, %v230
  %v250 = vmul.f32 %v165, %v230
  %v251 = vmul.f32 %v170, %v230
  %v252 = vmul.f32 %v175, %v230
  %v253 = vmul.f32 %v180, %v230
  %v254 = vmul.f32 %v185, %v230
  %v255 = vmul.f32 %v190, %v230
  %v256 = vmul.f32 %v195, %v230
  %v257 = vmul.f32 %v200, %v230
  %v258 = vmul.f32 %v205, %v230
  %v259 = vmul.f32 %v210, %v230
  %v260 = vmul.f32 %v215, %v230
  %v261 = vmul.f32 %v220, %v230
  %v262 = vmul.f32 %v225, %v230
  %v264 = vlaneseq
  %v265 = vshrl.u32 %v264, 7
  %v266 = vsub.s32 0, %v265
  %v267 = vrot.slane %v65, %v266
  %v269 = vadd.f32 %v267, %v231
  %v270 = vadd.f32 %v267, %v232
  %v271 = vadd.f32 %v267, %v233
  %v272 = vadd.f32 %v267, %v234
  %v273 = vadd.f32 %v267, %v235
  %v274 = vadd.f32 %v267, %v236
  %v275 = vadd.f32 %v267, %v237
  %v276 = vadd.f32 %v267, %v238
  %v277 = vadd.f32 %v267, %v239
  %v278 = vadd.f32 %v267, %v240
  %v279 = vadd.f32 %v267, %v241
  %v280 = vadd.f32 %v267, %v242
  %v281 = vadd.f32 %v267, %v243
  %v282 = vadd.f32 %v267, %v244
  %v283 = vadd.f32 %v267, %v245
  %v284 = vadd.f32 %v267, %v246
  %v285 = vadd.f32 %v267, %v247
  %v286 = vadd.f32 %v267, %v248
  %v287 = vadd.f32 %v267, %v249
  %v288 = vadd.f32 %v267, %v250
  %v289 = vadd.f32 %v267, %v251
  %v290 = vadd.f32 %v267, %v252
  %v291 = vadd.f32 %v267, %v253
  %v292 = vadd.f32 %v267, %v254
  %v293 = vadd.f32 %v267, %v255
  %v294 = vadd.f32 %v267, %v256
  %v295 = vadd.f32 %v267, %v257
  %v296 = vadd.f32 %v267, %v258
  %v297 = vadd.f32 %v267, %v259
  %v298 = vadd.f32 %v267, %v260
  %v299 = vadd.f32 %v267, %v261
  %v300 = vadd.f32 %v267, %v262
  %v301 = vld [vmem:[%s1 + $0x1] sm:$0x1]
  %302 = vset.pattern.permute.xlu0 1
  %303 = vperm.xlu0 %302, %v33
  %v304 = vpop.permute.xlu0 %303
  %306 = vset.pattern.permute.xlu0 1
  %307 = vperm.xlu0 %306, %v34
  %v308 = vpop.permute.xlu0 %307
  %310 = vset.pattern.permute.xlu0 1
  %311 = vperm.xlu0 %310, %v35
  %v312 = vpop.permute.xlu0 %311
  %314 = vset.pattern.permute.xlu0 1
  %315 = vperm.xlu0 %314, %v36
  %v316 = vpop.permute.xlu0 %315
  %318 = vset.pattern.permute.xlu0 1
  %319 = vperm.xlu0 %318, %v37
  %v320 = vpop.permute.xlu0 %319
  %322 = vset.pattern.permute.xlu0 1
  %323 = vperm.xlu0 %322, %v38
  %v324 = vpop.permute.xlu0 %323
  %326 = vset.pattern.permute.xlu0 1
  %327 = vperm.xlu0 %326, %v39
  %v328 = vpop.permute.xlu0 %327
  %330 = vset.pattern.permute.xlu0 1
  %331 = vperm.xlu0 %330, %v40
  %v332 = vpop.permute.xlu0 %331
  %334 = vset.pattern.permute.xlu0 1
  %335 = vperm.xlu0 %334, %v41
  %v336 = vpop.permute.xlu0 %335
  %338 = vset.pattern.permute.xlu0 1
  %339 = vperm.xlu0 %338, %v42
  %v340 = vpop.permute.xlu0 %339
  %342 = vset.pattern.permute.xlu0 1
  %343 = vperm.xlu0 %342, %v43
  %v344 = vpop.permute.xlu0 %343
  %346 = vset.pattern.permute.xlu0 1
  %347 = vperm.xlu0 %346, %v44
  %v348 = vpop.permute.xlu0 %347
  %350 = vset.pattern.permute.xlu0 1
  %351 = vperm.xlu0 %350, %v45
  %v352 = vpop.permute.xlu0 %351
  %354 = vset.pattern.permute.xlu0 1
  %355 = vperm.xlu0 %354, %v46
  %v356 = vpop.permute.xlu0 %355
  %358 = vset.pattern.permute.xlu0 1
  %359 = vperm.xlu0 %358, %v47
  %v360 = vpop.permute.xlu0 %359
  %362 = vset.pattern.permute.xlu0 1
  %363 = vperm.xlu0 %362, %v48
  %v364 = vpop.permute.xlu0 %363
  %366 = vset.pattern.permute.xlu0 1
  %367 = vperm.xlu0 %366, %v49
  %v368 = vpop.permute.xlu0 %367
  %370 = vset.pattern.permute.xlu0 1
  %371 = vperm.xlu0 %370, %v50
  %v372 = vpop.permute.xlu0 %371
  %374 = vset.pattern.permute.xlu0 1
  %375 = vperm.xlu0 %374, %v51
  %v376 = vpop.permute.xlu0 %375
  %378 = vset.pattern.permute.xlu0 1
  %379 = vperm.xlu0 %378, %v52
  %v380 = vpop.permute.xlu0 %379
  %382 = vset.pattern.permute.xlu0 1
  %383 = vperm.xlu0 %382, %v53
  %v384 = vpop.permute.xlu0 %383
  %386 = vset.pattern.permute.xlu0 1
  %387 = vperm.xlu0 %386, %v54
  %v388 = vpop.permute.xlu0 %387
  %390 = vset.pattern.permute.xlu0 1
  %391 = vperm.xlu0 %390, %v55
  %v392 = vpop.permute.xlu0 %391
  %394 = vset.pattern.permute.xlu0 1
  %395 = vperm.xlu0 %394, %v56
  %v396 = vpop.permute.xlu0 %395
  %398 = vset.pattern.permute.xlu0 1
  %399 = vperm.xlu0 %398, %v57
  %v400 = vpop.permute.xlu0 %399
  %402 = vset.pattern.permute.xlu0 1
  %403 = vperm.xlu0 %402, %v58
  %v404 = vpop.permute.xlu0 %403
  %406 = vset.pattern.permute.xlu0 1
  %407 = vperm.xlu0 %406, %v59
  %v408 = vpop.permute.xlu0 %407
  %410 = vset.pattern.permute.xlu0 1
  %411 = vperm.xlu0 %410, %v60
  %v412 = vpop.permute.xlu0 %411
  %414 = vset.pattern.permute.xlu0 1
  %415 = vperm.xlu0 %414, %v61
  %v416 = vpop.permute.xlu0 %415
  %418 = vset.pattern.permute.xlu0 1
  %419 = vperm.xlu0 %418, %v62
  %v420 = vpop.permute.xlu0 %419
  %422 = vset.pattern.permute.xlu0 1
  %423 = vperm.xlu0 %422, %v63
  %v424 = vpop.permute.xlu0 %423
  %426 = vset.pattern.permute.xlu0 1
  %427 = vperm.xlu0 %426, %v64
  %v428 = vpop.permute.xlu0 %427
  %v430 = vlaneseq
  %v431 = vshrl.u32 %v430, 7
  %v432 = vsub.s32 0, %v431
  %v433 = vrot.slane %v301, %v432
  %v434 = vmul.f32 %v304, %v433
  %v435 = vmul.f32 %v308, %v433
  %v436 = vmul.f32 %v312, %v433
  %v437 = vmul.f32 %v316, %v433
  %v438 = vmul.f32 %v320, %v433
  %v439 = vmul.f32 %v324, %v433
  %v440 = vmul.f32 %v328, %v433
  %v441 = vmul.f32 %v332, %v433
  %v442 = vmul.f32 %v336, %v433
  %v443 = vmul.f32 %v340, %v433
  %v444 = vmul.f32 %v344, %v433
  %v445 = vmul.f32 %v348, %v433
  %v446 = vmul.f32 %v352, %v433
  %v447 = vmul.f32 %v356, %v433
  %v448 = vmul.f32 %v360, %v433
  %v449 = vmul.f32 %v364, %v433
  %v450 = vmul.f32 %v368, %v433
  %v451 = vmul.f32 %v372, %v433
  %v452 = vmul.f32 %v376, %v433
  %v453 = vmul.f32 %v380, %v433
  %v454 = vmul.f32 %v384, %v433
  %v455 = vmul.f32 %v388, %v433
  %v456 = vmul.f32 %v392, %v433
  %v457 = vmul.f32 %v396, %v433
  %v458 = vmul.f32 %v400, %v433
  %v459 = vmul.f32 %v404, %v433
  %v460 = vmul.f32 %v408, %v433
  %v461 = vmul.f32 %v412, %v433
  %v462 = vmul.f32 %v416, %v433
  %v463 = vmul.f32 %v420, %v433
  %v464 = vmul.f32 %v424, %v433
  %v465 = vmul.f32 %v428, %v433
  %v466 = vadd.f32 %v269, %v434
  %v467 = vadd.f32 %v270, %v435
  %v468 = vadd.f32 %v271, %v436
  %v469 = vadd.f32 %v272, %v437
  %v470 = vadd.f32 %v273, %v438
  %v471 = vadd.f32 %v274, %v439
  %v472 = vadd.f32 %v275, %v440
  %v473 = vadd.f32 %v276, %v441
  %v474 = vadd.f32 %v277, %v442
  %v475 = vadd.f32 %v278, %v443
  %v476 = vadd.f32 %v279, %v444
  %v477 = vadd.f32 %v280, %v445
  %v478 = vadd.f32 %v281, %v446
  %v479 = vadd.f32 %v282, %v447
  %v480 = vadd.f32 %v283, %v448
  %v481 = vadd.f32 %v284, %v449
  %v482 = vadd.f32 %v285, %v450
  %v483 = vadd.f32 %v286, %v451
  %v484 = vadd.f32 %v287, %v452
  %v485 = vadd.f32 %v288, %v453
  %v486 = vadd.f32 %v289, %v454
  %v487 = vadd.f32 %v290, %v455
  %v488 = vadd.f32 %v291, %v456
  %v489 = vadd.f32 %v292, %v457
  %v490 = vadd.f32 %v293, %v458
  %v491 = vadd.f32 %v294, %v459
  %v492 = vadd.f32 %v295, %v460
  %v493 = vadd.f32 %v296, %v461
  %v494 = vadd.f32 %v297, %v462
  %v495 = vadd.f32 %v298, %v463
  %v496 = vadd.f32 %v299, %v464
  %v497 = vadd.f32 %v300, %v465
  %v498 = vmax.f32 %v466, 0.0
  %v499 = vmax.f32 %v467, 0.0
  %v500 = vmax.f32 %v468, 0.0
  %v501 = vmax.f32 %v469, 0.0
  %v502 = vmax.f32 %v470, 0.0
  %v503 = vmax.f32 %v471, 0.0
  %v504 = vmax.f32 %v472, 0.0
  %v505 = vmax.f32 %v473, 0.0
  %v506 = vmax.f32 %v474, 0.0
  %v507 = vmax.f32 %v475, 0.0
  %v508 = vmax.f32 %v476, 0.0
  %v509 = vmax.f32 %v477, 0.0
  %v510 = vmax.f32 %v478, 0.0
  %v511 = vmax.f32 %v479, 0.0
  %v512 = vmax.f32 %v480, 0.0
  %v513 = vmax.f32 %v481, 0.0
  %v514 = vmax.f32 %v482, 0.0
  %v515 = vmax.f32 %v483, 0.0
  %v516 = vmax.f32 %v484, 0.0
  %v517 = vmax.f32 %v485, 0.0
  %v518 = vmax.f32 %v486, 0.0
  %v519 = vmax.f32 %v487, 0.0
  %v520 = vmax.f32 %v488, 0.0
  %v521 = vmax.f32 %v489, 0.0
  %v522 = vmax.f32 %v490, 0.0
  %v523 = vmax.f32 %v491, 0.0
  %v524 = vmax.f32 %v492, 0.0
  %v525 = vmax.f32 %v493, 0.0
  %v526 = vmax.f32 %v494, 0.0
  %v527 = vmax.f32 %v495, 0.0
  %v528 = vmax.f32 %v496, 0.0
  %v529 = vmax.f32 %v497, 0.0
  %v530 = vpack.c.bf16 %v499, %v498
  %v531 = vpack.c.bf16 %v501, %v500
  %v532 = vpack.c.bf16 %v503, %v502
  %v533 = vpack.c.bf16 %v505, %v504
  %v534 = vpack.c.bf16 %v507, %v506
  %v535 = vpack.c.bf16 %v509, %v508
  %v536 = vpack.c.bf16 %v511, %v510
  %v537 = vpack.c.bf16 %v513, %v512
  %v538 = vpack.c.bf16 %v515, %v514
  %v539 = vpack.c.bf16 %v517, %v516
  %v540 = vpack.c.bf16 %v519, %v518
  %v541 = vpack.c.bf16 %v521, %v520
  %v542 = vpack.c.bf16 %v523, %v522
  %v543 = vpack.c.bf16 %v525, %v524
  %v544 = vpack.c.bf16 %v527, %v526
  %v545 = vpack.c.bf16 %v529, %v528
  %v546 = vld [vmem:[%s3] sm:$0xf]
  %v547 = vld [vmem:[%s3 + $0x4] sm:$0xf]
  %v548 = vld [vmem:[%s3 + $0x8] sm:$0xf]
  %v549 = vld [vmem:[%s3 + $0xc] sm:$0xf]
  %v550 = vld [vmem:[%s3 + $0x10] sm:$0xf]
  %v551 = vld [vmem:[%s3 + $0x14] sm:$0xf]
  %v552 = vld [vmem:[%s3 + $0x18] sm:$0xf]
  %v553 = vld [vmem:[%s3 + $0x1c] sm:$0xf]
  %v554 = vld [vmem:[%s4] sm:$0x1]
  %v556 = vlaneseq
  %v557 = vshrl.u32 %v556, 7
  %v558 = vsub.s32 0, %v557
  %v559 = vrot.slane %v554, %v558
  %v569 = vunpack.c.l.b16 %v546
  %v570 = vunpack.c.l.b16 %v547
  %v571 = vunpack.c.l.b16 %v548
  %v572 = vunpack.c.l.b16 %v549
  %v573 = vunpack.c.l.b16 %v550
  %v574 = vunpack.c.l.b16 %v551
  %v575 = vunpack.c.l.b16 %v552
  %v576 = vunpack.c.l.b16 %v553
  %v577 = vpack.c.b16 %v570, %v569
  %v578 = vpack.c.b16 %v572, %v571
  %v579 = vpack.c.b16 %v574, %v573
  %v580 = vpack.c.b16 %v576, %v575
  %vm585 = vcmask 523264
  %v587 = vsel %vm585, %v530, 0
  %v590 = vsel %vm585, %v531, 0
  %v593 = vsel %vm585, %v532, 0
  %v596 = vsel %vm585, %v533, 0
  %v599 = vsel %vm585, %v534, 0
  %v602 = vsel %vm585, %v535, 0
  %v605 = vsel %vm585, %v536, 0
  %v608 = vsel %vm585, %v537, 0
  %v611 = vsel %vm585, %v538, 0
  %v614 = vsel %vm585, %v539, 0
  %v617 = vsel %vm585, %v540, 0
  %v620 = vsel %vm585, %v541, 0
  %v623 = vsel %vm585, %v542, 0
  %v626 = vsel %vm585, %v543, 0
  %v629 = vsel %vm585, %v544, 0
  %v632 = vsel %vm585, %v545, 0
  %634 = vmatprep.subr.bf16.mxu0 0
  %635 = vmatpush1.bf16.msra.mxu0 %v577
  %636 = vmatprep.subr.bf16.mxu0 0
  %637 = vmatpush1.bf16.msra.mxu0 %v578
  %638 = vmatprep.subr.bf16.mxu0 0
  %639 = vmatpush1.bf16.msra.mxu0 %v579
  %640 = vmatprep.subr.bf16.mxu0 0
  %641 = vmatpush1.bf16.msra.mxu0 %v580
  %642 = vmatprep.subr.bf16.mxu0 0
  %643 = vmatpush1.bf16.msra.mxu0 0
  %644 = vmatprep.subr.bf16.mxu0 0
  %645 = vmatpush1.bf16.msra.mxu0 0
  %646 = vmatprep.subr.bf16.mxu0 0
  %647 = vmatpush1.bf16.msra.mxu0 0
  %648 = vmatprep.subr.bf16.mxu0 0
  %649 = vmatpush1.bf16.msra.mxu0 0
  %650 = vmatprep.subr.bf16.mxu0 0
  %651 = vmatpush1.bf16.msra.mxu0 0
  %652 = vmatprep.subr.bf16.mxu0 0
  %653 = vmatpush1.bf16.msra.mxu0 0
  %654 = vmatprep.subr.bf16.mxu0 0
  %655 = vmatpush1.bf16.msra.mxu0 0
  %656 = vmatprep.subr.bf16.mxu0 0
  %657 = vmatpush1.bf16.msra.mxu0 0
  %658 = vmatprep.subr.bf16.mxu0 0
  %659 = vmatpush1.bf16.msra.mxu0 0
  %660 = vmatprep.subr.bf16.mxu0 0
  %661 = vmatpush1.bf16.msra.mxu0 0
  %662 = vmatprep.subr.bf16.mxu0 0
  %663 = vmatpush1.bf16.msra.mxu0 0
  %664 = vmatprep.subr.bf16.mxu0 0
  %665 = vmatpush1.bf16.msra.mxu0 0
  %666 = vmatprep.mubr.bf16.mxu0 0
  %667 = vmatmul.mubr.bf16.gmra.mrb[0].mxu0 %v587
  %v668 = vpop.f32.mrb[0].mxu0
  %v669 = vadd.f32 %v559, %v668
  %v670 = vpop.f32.mrb[0].mxu0
  %v671 = vpop.f32.mrb[0].mxu0
  %v672 = vadd.f32 %v559, %v671
  %v673 = vpop.f32.mrb[0].mxu0
  %674 = vmatprep.mubr.bf16.mxu0 0
  %675 = vmatmul.mubr.bf16.gmra.mrb[0].mxu0 %v590
  %v676 = vpop.f32.mrb[0].mxu0
  %v677 = vadd.f32 %v559, %v676
  %v678 = vpop.f32.mrb[0].mxu0
  %v679 = vpop.f32.mrb[0].mxu0
  %v680 = vadd.f32 %v559, %v679
  %v681 = vpop.f32.mrb[0].mxu0
  %682 = vmatprep.mubr.bf16.mxu0 0
  %683 = vmatmul.mubr.bf16.gmra.mrb[0].mxu0 %v593
  %v684 = vpop.f32.mrb[0].mxu0
  %v685 = vadd.f32 %v559, %v684
  %v686 = vpop.f32.mrb[0].mxu0
  %v687 = vpop.f32.mrb[0].mxu0
  %v688 = vadd.f32 %v559, %v687
  %v689 = vpop.f32.mrb[0].mxu0
  %690 = vmatprep.mubr.bf16.mxu0 0
  %691 = vmatmul.mubr.bf16.gmra.mrb[0].mxu0 %v596
  %v692 = vpop.f32.mrb[0].mxu0
  %v693 = vadd.f32 %v559, %v692
  %v694 = vpop.f32.mrb[0].mxu0
  %v695 = vpop.f32.mrb[0].mxu0
  %v696 = vadd.f32 %v559, %v695
  %v697 = vpop.f32.mrb[0].mxu0
  %698 = vmatprep.mubr.bf16.mxu0 0
  %699 = vmatmul.mubr.bf16.gmra.mrb[0].mxu0 %v599
  %v700 = vpop.f32.mrb[0].mxu0
  %v701 = vadd.f32 %v559, %v700
  %v702 = vpop.f32.mrb[0].mxu0
  %v703 = vpop.f32.mrb[0].mxu0
  %v704 = vadd.f32 %v559, %v703
  %v705 = vpop.f32.mrb[0].mxu0
  %706 = vmatprep.mubr.bf16.mxu0 0
  %707 = vmatmul.mubr.bf16.gmra.mrb[0].mxu0 %v602
  %v708 = vpop.f32.mrb[0].mxu0
  %v709 = vadd.f32 %v559, %v708
  %v710 = vpop.f32.mrb[0].mxu0
  %v711 = vpop.f32.mrb[0].mxu0
  %v712 = vadd.f32 %v559, %v711
  %v713 = vpop.f32.mrb[0].mxu0
  %714 = vmatprep.mubr.bf16.mxu0 0
  %715 = vmatmul.mubr.bf16.gmra.mrb[0].mxu0 %v605
  %v716 = vpop.f32.mrb[0].mxu0
  %v717 = vadd.f32 %v559, %v716
  %v718 = vpop.f32.mrb[0].mxu0
  %v719 = vpop.f32.mrb[0].mxu0
  %v720 = vadd.f32 %v559, %v719
  %v721 = vpop.f32.mrb[0].mxu0
  %722 = vmatprep.mubr.bf16.mxu0 0
  %723 = vmatmul.mubr.bf16.gmra.mrb[0].mxu0 %v608
  %v724 = vpop.f32.mrb[0].mxu0
  %v725 = vadd.f32 %v559, %v724
  %v726 = vpop.f32.mrb[0].mxu0
  %v727 = vpop.f32.mrb[0].mxu0
  %v728 = vadd.f32 %v559, %v727
  %v729 = vpop.f32.mrb[0].mxu0
  %730 = vmatprep.mubr.bf16.mxu0 0
  %731 = vmatmul.mubr.bf16.gmra.mrb[0].mxu0 %v611
  %v732 = vpop.f32.mrb[0].mxu0
  %v733 = vadd.f32 %v559, %v732
  %v734 = vpop.f32.mrb[0].mxu0
  %v735 = vpop.f32.mrb[0].mxu0
  %v736 = vadd.f32 %v559, %v735
  %v737 = vpop.f32.mrb[0].mxu0
  %738 = vmatprep.mubr.bf16.mxu0 0
  %739 = vmatmul.mubr.bf16.gmra.mrb[0].mxu0 %v614
  %v740 = vpop.f32.mrb[0].mxu0
  %v741 = vadd.f32 %v559, %v740
  %v742 = vpop.f32.mrb[0].mxu0
  %v743 = vpop.f32.mrb[0].mxu0
  %v744 = vadd.f32 %v559, %v743
  %v745 = vpop.f32.mrb[0].mxu0
  %746 = vmatprep.mubr.bf16.mxu0 0
  %747 = vmatmul.mubr.bf16.gmra.mrb[0].mxu0 %v617
  %v748 = vpop.f32.mrb[0].mxu0
  %v749 = vadd.f32 %v559, %v748
  %v750 = vpop.f32.mrb[0].mxu0
  %v751 = vpop.f32.mrb[0].mxu0
  %v752 = vadd.f32 %v559, %v751
  %v753 = vpop.f32.mrb[0].mxu0
  %754 = vmatprep.mubr.bf16.mxu0 0
  %755 = vmatmul.mubr.bf16.gmra.mrb[0].mxu0 %v620
  %v756 = vpop.f32.mrb[0].mxu0
  %v757 = vadd.f32 %v559, %v756
  %v758 = vpop.f32.mrb[0].mxu0
  %v759 = vpop.f32.mrb[0].mxu0
  %v760 = vadd.f32 %v559, %v759
  %v761 = vpop.f32.mrb[0].mxu0
  %762 = vmatprep.mubr.bf16.mxu0 0
  %763 = vmatmul.mubr.bf16.gmra.mrb[0].mxu0 %v623
  %v764 = vpop.f32.mrb[0].mxu0
  %v765 = vadd.f32 %v559, %v764
  %v766 = vpop.f32.mrb[0].mxu0
  %v767 = vpop.f32.mrb[0].mxu0
  %v768 = vadd.f32 %v559, %v767
  %v769 = vpop.f32.mrb[0].mxu0
  %770 = vmatprep.mubr.bf16.mxu0 0
  %771 = vmatmul.mubr.bf16.gmra.mrb[0].mxu0 %v626
  %v772 = vpop.f32.mrb[0].mxu0
  %v773 = vadd.f32 %v559, %v772
  %v774 = vpop.f32.mrb[0].mxu0
  %v775 = vpop.f32.mrb[0].mxu0
  %v776 = vadd.f32 %v559, %v775
  %v777 = vpop.f32.mrb[0].mxu0
  %778 = vmatprep.mubr.bf16.mxu0 0
  %779 = vmatmul.mubr.bf16.gmra.mrb[0].mxu0 %v629
  %v780 = vpop.f32.mrb[0].mxu0
  %v781 = vadd.f32 %v559, %v780
  %v782 = vpop.f32.mrb[0].mxu0
  %v783 = vpop.f32.mrb[0].mxu0
  %v784 = vadd.f32 %v559, %v783
  %v785 = vpop.f32.mrb[0].mxu0
  %786 = vmatprep.mubr.bf16.mxu0 0
  %787 = vmatmul.mubr.bf16.gmra.mrb[0].mxu0 %v632
  %v788 = vpop.f32.mrb[0].mxu0
  %v789 = vadd.f32 %v559, %v788
  %v790 = vpop.f32.mrb[0].mxu0
  %v791 = vpop.f32.mrb[0].mxu0
  %v792 = vadd.f32 %v559, %v791
  %v793 = vpop.f32.mrb[0].mxu0
  %794 = vdwg.mxu0
  %v795 = vmax.f32 %v669, 0.0
  %v796 = vmax.f32 %v672, 0.0
  %v797 = vmax.f32 %v677, 0.0
  %v798 = vmax.f32 %v680, 0.0
  %v799 = vmax.f32 %v685, 0.0
  %v800 = vmax.f32 %v688, 0.0
  %v801 = vmax.f32 %v693, 0.0
  %v802 = vmax.f32 %v696, 0.0
  %v803 = vmax.f32 %v701, 0.0
  %v804 = vmax.f32 %v704, 0.0
  %v805 = vmax.f32 %v709, 0.0
  %v806 = vmax.f32 %v712, 0.0
  %v807 = vmax.f32 %v717, 0.0
  %v808 = vmax.f32 %v720, 0.0
  %v809 = vmax.f32 %v725, 0.0
  %v810 = vmax.f32 %v728, 0.0
  %v811 = vmax.f32 %v733, 0.0
  %v812 = vmax.f32 %v736, 0.0
  %v813 = vmax.f32 %v741, 0.0
  %v814 = vmax.f32 %v744, 0.0
  %v815 = vmax.f32 %v749, 0.0
  %v816 = vmax.f32 %v752, 0.0
  %v817 = vmax.f32 %v757, 0.0
  %v818 = vmax.f32 %v760, 0.0
  %v819 = vmax.f32 %v765, 0.0
  %v820 = vmax.f32 %v768, 0.0
  %v821 = vmax.f32 %v773, 0.0
  %v822 = vmax.f32 %v776, 0.0
  %v823 = vmax.f32 %v781, 0.0
  %v824 = vmax.f32 %v784, 0.0
  %v825 = vmax.f32 %v789, 0.0
  %v826 = vmax.f32 %v792, 0.0
  %v827 = vpack.c.bf16 %v796, %v795
  %v828 = vpack.c.bf16 %v798, %v797
  %v829 = vpack.c.bf16 %v800, %v799
  %v830 = vpack.c.bf16 %v802, %v801
  %v831 = vpack.c.bf16 %v804, %v803
  %v832 = vpack.c.bf16 %v806, %v805
  %v833 = vpack.c.bf16 %v808, %v807
  %v834 = vpack.c.bf16 %v810, %v809
  %v835 = vpack.c.bf16 %v812, %v811
  %v836 = vpack.c.bf16 %v814, %v813
  %v837 = vpack.c.bf16 %v816, %v815
  %v838 = vpack.c.bf16 %v818, %v817
  %v839 = vpack.c.bf16 %v820, %v819
  %v840 = vpack.c.bf16 %v822, %v821
  %v841 = vpack.c.bf16 %v824, %v823
  %v842 = vpack.c.bf16 %v826, %v825
  %v843 = vld [vmem:[%s5] sm:$0xff]
  %v844 = vld [vmem:[%s5 + $0x8] sm:$0xff]
  %v845 = vld [vmem:[%s5 + $0x10] sm:$0xff]
  %v846 = vld [vmem:[%s5 + $0x18] sm:$0xff]
  %v847 = vld [vmem:[%s5 + $0x20] sm:$0xff]
  %v848 = vld [vmem:[%s5 + $0x28] sm:$0xff]
  %v849 = vld [vmem:[%s5 + $0x30] sm:$0xff]
  %v850 = vld [vmem:[%s5 + $0x38] sm:$0xff]
  %v851 = vld [vmem:[%s5 + $0x40] sm:$0xff]
  %v852 = vld [vmem:[%s5 + $0x48] sm:$0xff]
  %v853 = vld [vmem:[%s5 + $0x50] sm:$0xff]
  %v854 = vld [vmem:[%s5 + $0x58] sm:$0xff]
  %v855 = vld [vmem:[%s5 + $0x60] sm:$0xff]
  %v856 = vld [vmem:[%s5 + $0x68] sm:$0xff]
  %v857 = vld [vmem:[%s5 + $0x70] sm:$0xff]
  %v858 = vld [vmem:[%s5 + $0x78] sm:$0xff]
  %v859 = vld [vmem:[%s6] sm:$0x3]
  %v861 = vlaneseq
  %v862 = vshrl.u32 %v861, 7
  %v863 = vsub.s32 0, %v862
  %v864 = vrot.slane %v859, %v863
  %v865 = vlaneseq
  %v866 = vshrl.u32 %v865, 7
  %v867 = vsub.s32 1, %v866
  %v868 = vrot.slane %v859, %v867
  %v887 = vunpack.c.l.b16 %v843
  %v888 = vunpack.c.h.b16 %v843
  %v889 = vunpack.c.l.b16 %v844
  %v890 = vunpack.c.h.b16 %v844
  %v891 = vunpack.c.l.b16 %v845
  %v892 = vunpack.c.h.b16 %v845
  %v893 = vunpack.c.l.b16 %v846
  %v894 = vunpack.c.h.b16 %v846
  %v895 = vunpack.c.l.b16 %v847
  %v896 = vunpack.c.h.b16 %v847
  %v897 = vunpack.c.l.b16 %v848
  %v898 = vunpack.c.h.b16 %v848
  %v899 = vunpack.c.l.b16 %v849
  %v900 = vunpack.c.h.b16 %v849
  %v901 = vunpack.c.l.b16 %v850
  %v902 = vunpack.c.h.b16 %v850
  %v903 = vunpack.c.l.b16 %v851
  %v904 = vunpack.c.h.b16 %v851
  %v905 = vunpack.c.l.b16 %v852
  %v906 = vunpack.c.h.b16 %v852
  %v907 = vunpack.c.l.b16 %v853
  %v908 = vunpack.c.h.b16 %v853
  %v909 = vunpack.c.l.b16 %v854
  %v910 = vunpack.c.h.b16 %v854
  %v911 = vunpack.c.l.b16 %v855
  %v912 = vunpack.c.h.b16 %v855
  %v913 = vunpack.c.l.b16 %v856
  %v914 = vunpack.c.h.b16 %v856
  %v915 = vunpack.c.l.b16 %v857
  %v916 = vunpack.c.h.b16 %v857
  %v917 = vunpack.c.l.b16 %v858
  %v918 = vunpack.c.h.b16 %v858
  %v919 = vpack.c.b16 %v889, %v887
  %v920 = vpack.c.b16 %v890, %v888
  %v921 = vpack.c.b16 %v893, %v891
  %v922 = vpack.c.b16 %v894, %v892
  %v923 = vpack.c.b16 %v897, %v895
  %v924 = vpack.c.b16 %v898, %v896
  %v925 = vpack.c.b16 %v901, %v899
  %v926 = vpack.c.b16 %v902, %v900
  %v927 = vpack.c.b16 %v905, %v903
  %v928 = vpack.c.b16 %v906, %v904
  %v929 = vpack.c.b16 %v909, %v907
  %v930 = vpack.c.b16 %v910, %v908
  %v931 = vpack.c.b16 %v913, %v911
  %v932 = vpack.c.b16 %v914, %v912
  %v933 = vpack.c.b16 %v917, %v915
  %v934 = vpack.c.b16 %v918, %v916
  %951 = vmatprep.subr.bf16.mxu0 %v920
  %952 = vmatpush1.bf16.msra.mxu0 %v919
  %953 = vmatprep.subr.bf16.mxu0 %v922
  %954 = vmatpush1.bf16.msra.mxu0 %v921
  %955 = vmatprep.subr.bf16.mxu0 %v924
  %956 = vmatpush1.bf16.msra.mxu0 %v923
  %957 = vmatprep.subr.bf16.mxu0 %v926
  %958 = vmatpush1.bf16.msra.mxu0 %v925
  %959 = vmatprep.subr.bf16.mxu0 %v928
  %960 = vmatpush1.bf16.msra.mxu0 %v927
  %961 = vmatprep.subr.bf16.mxu0 %v930
  %962 = vmatpush1.bf16.msra.mxu0 %v929
  %963 = vmatprep.subr.bf16.mxu0 %v932
  %964 = vmatpush1.bf16.msra.mxu0 %v931
  %965 = vmatprep.subr.bf16.mxu0 %v934
  %966 = vmatpush1.bf16.msra.mxu0 %v933
  %967 = vmatprep.subr.bf16.mxu0 0
  %968 = vmatpush1.bf16.msra.mxu0 0
  %969 = vmatprep.subr.bf16.mxu0 0
  %970 = vmatpush1.bf16.msra.mxu0 0
  %971 = vmatprep.subr.bf16.mxu0 0
  %972 = vmatpush1.bf16.msra.mxu0 0
  %973 = vmatprep.subr.bf16.mxu0 0
  %974 = vmatpush1.bf16.msra.mxu0 0
  %975 = vmatprep.subr.bf16.mxu0 0
  %976 = vmatpush1.bf16.msra.mxu0 0
  %977 = vmatprep.subr.bf16.mxu0 0
  %978 = vmatpush1.bf16.msra.mxu0 0
  %979 = vmatprep.subr.bf16.mxu0 0
  %980 = vmatpush1.bf16.msra.mxu0 0
  %981 = vmatprep.subr.bf16.mxu0 0
  %982 = vmatpush1.bf16.msra.mxu0 0
  %983 = vmatprep.mubr.bf16.mxu0 0
  %984 = vmatmul.mubr.bf16.gmra.mrb[0].mxu0 %v827
  %v985 = vpop.f32.mrb[0].mxu0
  %v986 = vadd.f32 %v864, %v985
  %v987 = vpop.f32.mrb[0].mxu0
  %v988 = vadd.f32 %v868, %v987
  %v989 = vpop.f32.mrb[0].mxu0
  %v990 = vadd.f32 %v864, %v989
  %v991 = vpop.f32.mrb[0].mxu0
  %v992 = vadd.f32 %v868, %v991
  %993 = vmatprep.mubr.bf16.mxu0 0
  %994 = vmatmul.mubr.bf16.gmra.mrb[0].mxu0 %v828
  %v995 = vpop.f32.mrb[0].mxu0
  %v996 = vadd.f32 %v864, %v995
  %v997 = vpop.f32.mrb[0].mxu0
  %v998 = vadd.f32 %v868, %v997
  %v999 = vpop.f32.mrb[0].mxu0
  %v1000 = vadd.f32 %v864, %v999
  %v1001 = vpop.f32.mrb[0].mxu0
  %v1002 = vadd.f32 %v868, %v1001
  %1003 = vmatprep.mubr.bf16.mxu0 0
  %1004 = vmatmul.mubr.bf16.gmra.mrb[0].mxu0 %v829
  %v1005 = vpop.f32.mrb[0].mxu0
  %v1006 = vadd.f32 %v864, %v1005
  %v1007 = vpop.f32.mrb[0].mxu0
  %v1008 = vadd.f32 %v868, %v1007
  %v1009 = vpop.f32.mrb[0].mxu0
  %v1010 = vadd.f32 %v864, %v1009
  %v1011 = vpop.f32.mrb[0].mxu0
  %v1012 = vadd.f32 %v868, %v1011
  %1013 = vmatprep.mubr.bf16.mxu0 0
  %1014 = vmatmul.mubr.bf16.gmra.mrb[0].mxu0 %v830
  %v1015 = vpop.f32.mrb[0].mxu0
  %v1016 = vadd.f32 %v864, %v1015
  %v1017 = vpop.f32.mrb[0].mxu0
  %v1018 = vadd.f32 %v868, %v1017
  %v1019 = vpop.f32.mrb[0].mxu0
  %v1020 = vadd.f32 %v864, %v1019
  %v1021 = vpop.f32.mrb[0].mxu0
  %v1022 = vadd.f32 %v868, %v1021
  %1023 = vmatprep.mubr.bf16.mxu0 0
  %1024 = vmatmul.mubr.bf16.gmra.mrb[0].mxu0 %v831
  %v1025 = vpop.f32.mrb[0].mxu0
  %v1026 = vadd.f32 %v864, %v1025
  %v1027 = vpop.f32.mrb[0].mxu0
  %v1028 = vadd.f32 %v868, %v1027
  %v1029 = vpop.f32.mrb[0].mxu0
  %v1030 = vadd.f32 %v864, %v1029
  %v1031 = vpop.f32.mrb[0].mxu0
  %v1032 = vadd.f32 %v868, %v1031
  %1033 = vmatprep.mubr.bf16.mxu0 0
  %1034 = vmatmul.mubr.bf16.gmra.mrb[0].mxu0 %v832
  %v1035 = vpop.f32.mrb[0].mxu0
  %v1036 = vadd.f32 %v864, %v1035
  %v1037 = vpop.f32.mrb[0].mxu0
  %v1038 = vadd.f32 %v868, %v1037
  %v1039 = vpop.f32.mrb[0].mxu0
  %v1040 = vadd.f32 %v864, %v1039
  %v1041 = vpop.f32.mrb[0].mxu0
  %v1042 = vadd.f32 %v868, %v1041
  %1043 = vmatprep.mubr.bf16.mxu0 0
  %1044 = vmatmul.mubr.bf16.gmra.mrb[0].mxu0 %v833
  %v1045 = vpop.f32.mrb[0].mxu0
  %v1046 = vadd.f32 %v864, %v1045
  %v1047 = vpop.f32.mrb[0].mxu0
  %v1048 = vadd.f32 %v868, %v1047
  %v1049 = vpop.f32.mrb[0].mxu0
  %v1050 = vadd.f32 %v864, %v1049
  %v1051 = vpop.f32.mrb[0].mxu0
  %v1052 = vadd.f32 %v868, %v1051
  %1053 = vmatprep.mubr.bf16.mxu0 0
  %1054 = vmatmul.mubr.bf16.gmra.mrb[0].mxu0 %v834
  %v1055 = vpop.f32.mrb[0].mxu0
  %v1056 = vadd.f32 %v864, %v1055
  %v1057 = vpop.f32.mrb[0].mxu0
  %v1058 = vadd.f32 %v868, %v1057
  %v1059 = vpop.f32.mrb[0].mxu0
  %v1060 = vadd.f32 %v864, %v1059
  %v1061 = vpop.f32.mrb[0].mxu0
  %v1062 = vadd.f32 %v868, %v1061
  %1063 = vmatprep.mubr.bf16.mxu0 0
  %1064 = vmatmul.mubr.bf16.gmra.mrb[0].mxu0 %v835
  %v1065 = vpop.f32.mrb[0].mxu0
  %v1066 = vadd.f32 %v864, %v1065
  %v1067 = vpop.f32.mrb[0].mxu0
  %v1068 = vadd.f32 %v868, %v1067
  %v1069 = vpop.f32.mrb[0].mxu0
  %v1070 = vadd.f32 %v864, %v1069
  %v1071 = vpop.f32.mrb[0].mxu0
  %v1072 = vadd.f32 %v868, %v1071
  %1073 = vmatprep.mubr.bf16.mxu0 0
  %1074 = vmatmul.mubr.bf16.gmra.mrb[0].mxu0 %v836
  %v1075 = vpop.f32.mrb[0].mxu0
  %v1076 = vadd.f32 %v864, %v1075
  %v1077 = vpop.f32.mrb[0].mxu0
  %v1078 = vadd.f32 %v868, %v1077
  %v1079 = vpop.f32.mrb[0].mxu0
  %v1080 = vadd.f32 %v864, %v1079
  %v1081 = vpop.f32.mrb[0].mxu0
  %v1082 = vadd.f32 %v868, %v1081
  %1083 = vmatprep.mubr.bf16.mxu0 0
  %1084 = vmatmul.mubr.bf16.gmra.mrb[0].mxu0 %v837
  %v1085 = vpop.f32.mrb[0].mxu0
  %v1086 = vadd.f32 %v864, %v1085
  %v1087 = vpop.f32.mrb[0].mxu0
  %v1088 = vadd.f32 %v868, %v1087
  %v1089 = vpop.f32.mrb[0].mxu0
  %v1090 = vadd.f32 %v864, %v1089
  %v1091 = vpop.f32.mrb[0].mxu0
  %v1092 = vadd.f32 %v868, %v1091
  %1093 = vmatprep.mubr.bf16.mxu0 0
  %1094 = vmatmul.mubr.bf16.gmra.mrb[0].mxu0 %v838
  %v1095 = vpop.f32.mrb[0].mxu0
  %v1096 = vadd.f32 %v864, %v1095
  %v1097 = vpop.f32.mrb[0].mxu0
  %v1098 = vadd.f32 %v868, %v1097
  %v1099 = vpop.f32.mrb[0].mxu0
  %v1100 = vadd.f32 %v864, %v1099
  %v1101 = vpop.f32.mrb[0].mxu0
  %v1102 = vadd.f32 %v868, %v1101
  %1103 = vmatprep.mubr.bf16.mxu0 0
  %1104 = vmatmul.mubr.bf16.gmra.mrb[0].mxu0 %v839
  %v1105 = vpop.f32.mrb[0].mxu0
  %v1106 = vadd.f32 %v864, %v1105
  %v1107 = vpop.f32.mrb[0].mxu0
  %v1108 = vadd.f32 %v868, %v1107
  %v1109 = vpop.f32.mrb[0].mxu0
  %v1110 = vadd.f32 %v864, %v1109
  %v1111 = vpop.f32.mrb[0].mxu0
  %v1112 = vadd.f32 %v868, %v1111
  %1113 = vmatprep.mubr.bf16.mxu0 0
  %1114 = vmatmul.mubr.bf16.gmra.mrb[0].mxu0 %v840
  %v1115 = vpop.f32.mrb[0].mxu0
  %v1116 = vadd.f32 %v864, %v1115
  %v1117 = vpop.f32.mrb[0].mxu0
  %v1118 = vadd.f32 %v868, %v1117
  %v1119 = vpop.f32.mrb[0].mxu0
  %v1120 = vadd.f32 %v864, %v1119
  %v1121 = vpop.f32.mrb[0].mxu0
  %v1122 = vadd.f32 %v868, %v1121
  %1123 = vmatprep.mubr.bf16.mxu0 0
  %1124 = vmatmul.mubr.bf16.gmra.mrb[0].mxu0 %v841
  %v1125 = vpop.f32.mrb[0].mxu0
  %v1126 = vadd.f32 %v864, %v1125
  %v1127 = vpop.f32.mrb[0].mxu0
  %v1128 = vadd.f32 %v868, %v1127
  %v1129 = vpop.f32.mrb[0].mxu0
  %v1130 = vadd.f32 %v864, %v1129
  %v1131 = vpop.f32.mrb[0].mxu0
  %v1132 = vadd.f32 %v868, %v1131
  %1133 = vmatprep.mubr.bf16.mxu0 0
  %1134 = vmatmul.mubr.bf16.gmra.mrb[0].mxu0 %v842
  %v1135 = vpop.f32.mrb[0].mxu0
  %v1136 = vadd.f32 %v864, %v1135
  %v1137 = vpop.f32.mrb[0].mxu0
  %v1138 = vadd.f32 %v868, %v1137
  %v1139 = vpop.f32.mrb[0].mxu0
  %v1140 = vadd.f32 %v864, %v1139
  %v1141 = vpop.f32.mrb[0].mxu0
  %v1142 = vadd.f32 %v868, %v1141
  %1143 = vdwg.mxu0
  %v1144 = vmax.f32 %v986, 0.0
  %v1145 = vmax.f32 %v988, 0.0
  %v1146 = vmax.f32 %v990, 0.0
  %v1147 = vmax.f32 %v992, 0.0
  %v1148 = vmax.f32 %v996, 0.0
  %v1149 = vmax.f32 %v998, 0.0
  %v1150 = vmax.f32 %v1000, 0.0
  %v1151 = vmax.f32 %v1002, 0.0
  %v1152 = vmax.f32 %v1006, 0.0
  %v1153 = vmax.f32 %v1008, 0.0
  %v1154 = vmax.f32 %v1010, 0.0
  %v1155 = vmax.f32 %v1012, 0.0
  %v1156 = vmax.f32 %v1016, 0.0
  %v1157 = vmax.f32 %v1018, 0.0
  %v1158 = vmax.f32 %v1020, 0.0
  %v1159 = vmax.f32 %v1022, 0.0
  %v1160 = vmax.f32 %v1026, 0.0
  %v1161 = vmax.f32 %v1028, 0.0
  %v1162 = vmax.f32 %v1030, 0.0
  %v1163 = vmax.f32 %v1032, 0.0
  %v1164 = vmax.f32 %v1036, 0.0
  %v1165 = vmax.f32 %v1038, 0.0
  %v1166 = vmax.f32 %v1040, 0.0
  %v1167 = vmax.f32 %v1042, 0.0
  %v1168 = vmax.f32 %v1046, 0.0
  %v1169 = vmax.f32 %v1048, 0.0
  %v1170 = vmax.f32 %v1050, 0.0
  %v1171 = vmax.f32 %v1052, 0.0
  %v1172 = vmax.f32 %v1056, 0.0
  %v1173 = vmax.f32 %v1058, 0.0
  %v1174 = vmax.f32 %v1060, 0.0
  %v1175 = vmax.f32 %v1062, 0.0
  %v1176 = vmax.f32 %v1066, 0.0
  %v1177 = vmax.f32 %v1068, 0.0
  %v1178 = vmax.f32 %v1070, 0.0
  %v1179 = vmax.f32 %v1072, 0.0
  %v1180 = vmax.f32 %v1076, 0.0
  %v1181 = vmax.f32 %v1078, 0.0
  %v1182 = vmax.f32 %v1080, 0.0
  %v1183 = vmax.f32 %v1082, 0.0
  %v1184 = vmax.f32 %v1086, 0.0
  %v1185 = vmax.f32 %v1088, 0.0
  %v1186 = vmax.f32 %v1090, 0.0
  %v1187 = vmax.f32 %v1092, 0.0
  %v1188 = vmax.f32 %v1096, 0.0
  %v1189 = vmax.f32 %v1098, 0.0
  %v1190 = vmax.f32 %v1100, 0.0
  %v1191 = vmax.f32 %v1102, 0.0
  %v1192 = vmax.f32 %v1106, 0.0
  %v1193 = vmax.f32 %v1108, 0.0
  %v1194 = vmax.f32 %v1110, 0.0
  %v1195 = vmax.f32 %v1112, 0.0
  %v1196 = vmax.f32 %v1116, 0.0
  %v1197 = vmax.f32 %v1118, 0.0
  %v1198 = vmax.f32 %v1120, 0.0
  %v1199 = vmax.f32 %v1122, 0.0
  %v1200 = vmax.f32 %v1126, 0.0
  %v1201 = vmax.f32 %v1128, 0.0
  %v1202 = vmax.f32 %v1130, 0.0
  %v1203 = vmax.f32 %v1132, 0.0
  %v1204 = vmax.f32 %v1136, 0.0
  %v1205 = vmax.f32 %v1138, 0.0
  %v1206 = vmax.f32 %v1140, 0.0
  %v1207 = vmax.f32 %v1142, 0.0
  %v1208 = vpack.c.bf16 %v1146, %v1144
  %v1209 = vpack.c.bf16 %v1147, %v1145
  %v1210 = vpack.c.bf16 %v1150, %v1148
  %v1211 = vpack.c.bf16 %v1151, %v1149
  %v1212 = vpack.c.bf16 %v1154, %v1152
  %v1213 = vpack.c.bf16 %v1155, %v1153
  %v1214 = vpack.c.bf16 %v1158, %v1156
  %v1215 = vpack.c.bf16 %v1159, %v1157
  %v1216 = vpack.c.bf16 %v1162, %v1160
  %v1217 = vpack.c.bf16 %v1163, %v1161
  %v1218 = vpack.c.bf16 %v1166, %v1164
  %v1219 = vpack.c.bf16 %v1167, %v1165
  %v1220 = vpack.c.bf16 %v1170, %v1168
  %v1221 = vpack.c.bf16 %v1171, %v1169
  %v1222 = vpack.c.bf16 %v1174, %v1172
  %v1223 = vpack.c.bf16 %v1175, %v1173
  %v1224 = vpack.c.bf16 %v1178, %v1176
  %v1225 = vpack.c.bf16 %v1179, %v1177
  %v1226 = vpack.c.bf16 %v1182, %v1180
  %v1227 = vpack.c.bf16 %v1183, %v1181
  %v1228 = vpack.c.bf16 %v1186, %v1184
  %v1229 = vpack.c.bf16 %v1187, %v1185
  %v1230 = vpack.c.bf16 %v1190, %v1188
  %v1231 = vpack.c.bf16 %v1191, %v1189
  %v1232 = vpack.c.bf16 %v1194, %v1192
  %v1233 = vpack.c.bf16 %v1195, %v1193
  %v1234 = vpack.c.bf16 %v1198, %v1196
  %v1235 = vpack.c.bf16 %v1199, %v1197
  %v1236 = vpack.c.bf16 %v1202, %v1200
  %v1237 = vpack.c.bf16 %v1203, %v1201
  %v1238 = vpack.c.bf16 %v1206, %v1204
  %v1239 = vpack.c.bf16 %v1207, %v1205
  %v1240 = vld [vmem:[%s7] sm:$0xf]
  %v1241 = vld [vmem:[%s7 + $0x4] sm:$0xf]
  %v1242 = vld [vmem:[%s7 + $0x8] sm:$0xf]
  %v1243 = vld [vmem:[%s7 + $0xc] sm:$0xf]
  %v1244 = vld [vmem:[%s7 + $0x10] sm:$0xf]
  %v1245 = vld [vmem:[%s7 + $0x14] sm:$0xf]
  %v1246 = vld [vmem:[%s7 + $0x18] sm:$0xf]
  %v1247 = vld [vmem:[%s7 + $0x1c] sm:$0xf]
  %v1248 = vld [vmem:[%s7 + $0x20] sm:$0xf]
  %v1249 = vld [vmem:[%s7 + $0x24] sm:$0xf]
  %v1250 = vld [vmem:[%s7 + $0x28] sm:$0xf]
  %v1251 = vld [vmem:[%s7 + $0x2c] sm:$0xf]
  %v1252 = vld [vmem:[%s7 + $0x30] sm:$0xf]
  %v1253 = vld [vmem:[%s7 + $0x34] sm:$0xf]
  %v1254 = vld [vmem:[%s7 + $0x38] sm:$0xf]
  %v1255 = vld [vmem:[%s7 + $0x3c] sm:$0xf]
  %v1256 = vld [vmem:[%s7 + $0x40] sm:$0xf]
  %v1257 = vld [vmem:[%s7 + $0x44] sm:$0xf]
  %v1258 = vld [vmem:[%s7 + $0x48] sm:$0xf]
  %v1259 = vld [vmem:[%s7 + $0x4c] sm:$0xf]
  %v1260 = vld [vmem:[%s7 + $0x50] sm:$0xf]
  %v1261 = vld [vmem:[%s7 + $0x54] sm:$0xf]
  %v1262 = vld [vmem:[%s7 + $0x58] sm:$0xf]
  %v1263 = vld [vmem:[%s7 + $0x5c] sm:$0xf]
  %v1264 = vld [vmem:[%s7 + $0x60] sm:$0xf]
  %v1265 = vld [vmem:[%s7 + $0x64] sm:$0xf]
  %v1266 = vld [vmem:[%s7 + $0x68] sm:$0xf]
  %v1267 = vld [vmem:[%s7 + $0x6c] sm:$0xf]
  %v1268 = vld [vmem:[%s7 + $0x70] sm:$0xf]
  %v1269 = vld [vmem:[%s7 + $0x74] sm:$0xf]
  %v1270 = vld [vmem:[%s7 + $0x78] sm:$0xf]
  %v1271 = vld [vmem:[%s7 + $0x7c] sm:$0xf]
  %v1272 = vld [vmem:[%s8] sm:$0x1]
  %v1274 = vlaneseq
  %v1275 = vshrl.u32 %v1274, 7
  %v1276 = vsub.s32 0, %v1275
  %v1277 = vrot.slane %v1272, %v1276
  %v1311 = vunpack.c.l.b16 %v1240
  %v1312 = vunpack.c.l.b16 %v1241
  %v1313 = vunpack.c.l.b16 %v1242
  %v1314 = vunpack.c.l.b16 %v1243
  %v1315 = vunpack.c.l.b16 %v1244
  %v1316 = vunpack.c.l.b16 %v1245
  %v1317 = vunpack.c.l.b16 %v1246
  %v1318 = vunpack.c.l.b16 %v1247
  %v1319 = vunpack.c.l.b16 %v1248
  %v1320 = vunpack.c.l.b16 %v1249
  %v1321 = vunpack.c.l.b16 %v1250
  %v1322 = vunpack.c.l.b16 %v1251
  %v1323 = vunpack.c.l.b16 %v1252
  %v1324 = vunpack.c.l.b16 %v1253
  %v1325 = vunpack.c.l.b16 %v1254
  %v1326 = vunpack.c.l.b16 %v1255
  %v1327 = vunpack.c.l.b16 %v1256
  %v1328 = vunpack.c.l.b16 %v1257
  %v1329 = vunpack.c.l.b16 %v1258
  %v1330 = vunpack.c.l.b16 %v1259
  %v1331 = vunpack.c.l.b16 %v1260
  %v1332 = vunpack.c.l.b16 %v1261
  %v1333 = vunpack.c.l.b16 %v1262
  %v1334 = vunpack.c.l.b16 %v1263
  %v1335 = vunpack.c.l.b16 %v1264
  %v1336 = vunpack.c.l.b16 %v1265
  %v1337 = vunpack.c.l.b16 %v1266
  %v1338 = vunpack.c.l.b16 %v1267
  %v1339 = vunpack.c.l.b16 %v1268
  %v1340 = vunpack.c.l.b16 %v1269
  %v1341 = vunpack.c.l.b16 %v1270
  %v1342 = vunpack.c.l.b16 %v1271
  %v1343 = vpack.c.b16 %v1312, %v1311
  %v1344 = vpack.c.b16 %v1314, %v1313
  %v1345 = vpack.c.b16 %v1316, %v1315
  %v1346 = vpack.c.b16 %v1318, %v1317
  %v1347 = vpack.c.b16 %v1320, %v1319
  %v1348 = vpack.c.b16 %v1322, %v1321
  %v1349 = vpack.c.b16 %v1324, %v1323
  %v1350 = vpack.c.b16 %v1326, %v1325
  %v1351 = vpack.c.b16 %v1328, %v1327
  %v1352 = vpack.c.b16 %v1330, %v1329
  %v1353 = vpack.c.b16 %v1332, %v1331
  %v1354 = vpack.c.b16 %v1334, %v1333
  %v1355 = vpack.c.b16 %v1336, %v1335
  %v1356 = vpack.c.b16 %v1338, %v1337
  %v1357 = vpack.c.b16 %v1340, %v1339
  %v1358 = vpack.c.b16 %v1342, %v1341
  %1375 = vmatprep.subr.bf16.mxu0 0
  %1376 = vmatpush1.bf16.msra.mxu0 %v1343
  %1377 = vmatprep.subr.bf16.mxu0 0
  %1378 = vmatpush1.bf16.msra.mxu0 %v1344
  %1379 = vmatprep.subr.bf16.mxu0 0
  %1380 = vmatpush1.bf16.msra.mxu0 %v1345
  %1381 = vmatprep.subr.bf16.mxu0 0
  %1382 = vmatpush1.bf16.msra.mxu0 %v1346
  %1383 = vmatprep.subr.bf16.mxu0 0
  %1384 = vmatpush1.bf16.msra.mxu0 %v1347
  %1385 = vmatprep.subr.bf16.mxu0 0
  %1386 = vmatpush1.bf16.msra.mxu0 %v1348
  %1387 = vmatprep.subr.bf16.mxu0 0
  %1388 = vmatpush1.bf16.msra.mxu0 %v1349
  %1389 = vmatprep.subr.bf16.mxu0 0
  %1390 = vmatpush1.bf16.msra.mxu0 %v1350
  %1391 = vmatprep.subr.bf16.mxu0 0
  %1392 = vmatpush1.bf16.msra.mxu0 %v1351
  %1393 = vmatprep.subr.bf16.mxu0 0
  %1394 = vmatpush1.bf16.msra.mxu0 %v1352
  %1395 = vmatprep.subr.bf16.mxu0 0
  %1396 = vmatpush1.bf16.msra.mxu0 %v1353
  %1397 = vmatprep.subr.bf16.mxu0 0
  %1398 = vmatpush1.bf16.msra.mxu0 %v1354
  %1399 = vmatprep.subr.bf16.mxu0 0
  %1400 = vmatpush1.bf16.msra.mxu0 %v1355
  %1401 = vmatprep.subr.bf16.mxu0 0
  %1402 = vmatpush1.bf16.msra.mxu0 %v1356
  %1403 = vmatprep.subr.bf16.mxu0 0
  %1404 = vmatpush1.bf16.msra.mxu0 %v1357
  %1405 = vmatprep.subr.bf16.mxu0 0
  %1406 = vmatpush1.bf16.msra.mxu0 %v1358
  %1407 = vmatprep.mubr.bf16.mxu0 %v1209
  %1408 = vmatmul.mubr.bf16.gmra.mrb[0].mxu0 %v1208
  %v1409 = vpop.f32.mrb[0].mxu0
  %v1410 = vadd.f32 %v1277, %v1409
  %v1411 = vpop.f32.mrb[0].mxu0
  %v1412 = vpop.f32.mrb[0].mxu0
  %v1413 = vadd.f32 %v1277, %v1412
  %v1414 = vpop.f32.mrb[0].mxu0
  %1415 = vmatprep.mubr.bf16.mxu0 %v1211
  %1416 = vmatmul.mubr.bf16.gmra.mrb[0].mxu0 %v1210
  %v1417 = vpop.f32.mrb[0].mxu0
  %v1418 = vadd.f32 %v1277, %v1417
  %v1419 = vpop.f32.mrb[0].mxu0
  %v1420 = vpop.f32.mrb[0].mxu0
  %v1421 = vadd.f32 %v1277, %v1420
  %v1422 = vpop.f32.mrb[0].mxu0
  %1423 = vmatprep.mubr.bf16.mxu0 %v1213
  %1424 = vmatmul.mubr.bf16.gmra.mrb[0].mxu0 %v1212
  %v1425 = vpop.f32.mrb[0].mxu0
  %v1426 = vadd.f32 %v1277, %v1425
  %v1427 = vpop.f32.mrb[0].mxu0
  %v1428 = vpop.f32.mrb[0].mxu0
  %v1429 = vadd.f32 %v1277, %v1428
  %v1430 = vpop.f32.mrb[0].mxu0
  %1431 = vmatprep.mubr.bf16.mxu0 %v1215
  %1432 = vmatmul.mubr.bf16.gmra.mrb[0].mxu0 %v1214
  %v1433 = vpop.f32.mrb[0].mxu0
  %v1434 = vadd.f32 %v1277, %v1433
  %v1435 = vpop.f32.mrb[0].mxu0
  %v1436 = vpop.f32.mrb[0].mxu0
  %v1437 = vadd.f32 %v1277, %v1436
  %v1438 = vpop.f32.mrb[0].mxu0
  %1439 = vmatprep.mubr.bf16.mxu0 %v1217
  %1440 = vmatmul.mubr.bf16.gmra.mrb[0].mxu0 %v1216
  %v1441 = vpop.f32.mrb[0].mxu0
  %v1442 = vadd.f32 %v1277, %v1441
  %v1443 = vpop.f32.mrb[0].mxu0
  %v1444 = vpop.f32.mrb[0].mxu0
  %v1445 = vadd.f32 %v1277, %v1444
  %v1446 = vpop.f32.mrb[0].mxu0
  %1447 = vmatprep.mubr.bf16.mxu0 %v1219
  %1448 = vmatmul.mubr.bf16.gmra.mrb[0].mxu0 %v1218
  %v1449 = vpop.f32.mrb[0].mxu0
  %v1450 = vadd.f32 %v1277, %v1449
  %v1451 = vpop.f32.mrb[0].mxu0
  %v1452 = vpop.f32.mrb[0].mxu0
  %v1453 = vadd.f32 %v1277, %v1452
  %v1454 = vpop.f32.mrb[0].mxu0
  %1455 = vmatprep.mubr.bf16.mxu0 %v1221
  %1456 = vmatmul.mubr.bf16.gmra.mrb[0].mxu0 %v1220
  %v1457 = vpop.f32.mrb[0].mxu0
  %v1458 = vadd.f32 %v1277, %v1457
  %v1459 = vpop.f32.mrb[0].mxu0
  %v1460 = vpop.f32.mrb[0].mxu0
  %v1461 = vadd.f32 %v1277, %v1460
  %v1462 = vpop.f32.mrb[0].mxu0
  %1463 = vmatprep.mubr.bf16.mxu0 %v1223
  %1464 = vmatmul.mubr.bf16.gmra.mrb[0].mxu0 %v1222
  %v1465 = vpop.f32.mrb[0].mxu0
  %v1466 = vadd.f32 %v1277, %v1465
  %v1467 = vpop.f32.mrb[0].mxu0
  %v1468 = vpop.f32.mrb[0].mxu0
  %v1469 = vadd.f32 %v1277, %v1468
  %v1470 = vpop.f32.mrb[0].mxu0
  %1471 = vmatprep.mubr.bf16.mxu0 %v1225
  %1472 = vmatmul.mubr.bf16.gmra.mrb[0].mxu0 %v1224
  %v1473 = vpop.f32.mrb[0].mxu0
  %v1474 = vadd.f32 %v1277, %v1473
  %v1475 = vpop.f32.mrb[0].mxu0
  %v1476 = vpop.f32.mrb[0].mxu0
  %v1477 = vadd.f32 %v1277, %v1476
  %v1478 = vpop.f32.mrb[0].mxu0
  %1479 = vmatprep.mubr.bf16.mxu0 %v1227
  %1480 = vmatmul.mubr.bf16.gmra.mrb[0].mxu0 %v1226
  %v1481 = vpop.f32.mrb[0].mxu0
  %v1482 = vadd.f32 %v1277, %v1481
  %v1483 = vpop.f32.mrb[0].mxu0
  %v1484 = vpop.f32.mrb[0].mxu0
  %v1485 = vadd.f32 %v1277, %v1484
  %v1486 = vpop.f32.mrb[0].mxu0
  %1487 = vmatprep.mubr.bf16.mxu0 %v1229
  %1488 = vmatmul.mubr.bf16.gmra.mrb[0].mxu0 %v1228
  %v1489 = vpop.f32.mrb[0].mxu0
  %v1490 = vadd.f32 %v1277, %v1489
  %v1491 = vpop.f32.mrb[0].mxu0
  %v1492 = vpop.f32.mrb[0].mxu0
  %v1493 = vadd.f32 %v1277, %v1492
  %v1494 = vpop.f32.mrb[0].mxu0
  %1495 = vmatprep.mubr.bf16.mxu0 %v1231
  %1496 = vmatmul.mubr.bf16.gmra.mrb[0].mxu0 %v1230
  %v1497 = vpop.f32.mrb[0].mxu0
  %v1498 = vadd.f32 %v1277, %v1497
  %v1499 = vpop.f32.mrb[0].mxu0
  %v1500 = vpop.f32.mrb[0].mxu0
  %v1501 = vadd.f32 %v1277, %v1500
  %v1502 = vpop.f32.mrb[0].mxu0
  %1503 = vmatprep.mubr.bf16.mxu0 %v1233
  %1504 = vmatmul.mubr.bf16.gmra.mrb[0].mxu0 %v1232
  %v1505 = vpop.f32.mrb[0].mxu0
  %v1506 = vadd.f32 %v1277, %v1505
  %v1507 = vpop.f32.mrb[0].mxu0
  %v1508 = vpop.f32.mrb[0].mxu0
  %v1509 = vadd.f32 %v1277, %v1508
  %v1510 = vpop.f32.mrb[0].mxu0
  %1511 = vmatprep.mubr.bf16.mxu0 %v1235
  %1512 = vmatmul.mubr.bf16.gmra.mrb[0].mxu0 %v1234
  %v1513 = vpop.f32.mrb[0].mxu0
  %v1514 = vadd.f32 %v1277, %v1513
  %v1515 = vpop.f32.mrb[0].mxu0
  %v1516 = vpop.f32.mrb[0].mxu0
  %v1517 = vadd.f32 %v1277, %v1516
  %v1518 = vpop.f32.mrb[0].mxu0
  %1519 = vmatprep.mubr.bf16.mxu0 %v1237
  %1520 = vmatmul.mubr.bf16.gmra.mrb[0].mxu0 %v1236
  %v1521 = vpop.f32.mrb[0].mxu0
  %v1522 = vadd.f32 %v1277, %v1521
  %v1523 = vpop.f32.mrb[0].mxu0
  %v1524 = vpop.f32.mrb[0].mxu0
  %v1525 = vadd.f32 %v1277, %v1524
  %v1526 = vpop.f32.mrb[0].mxu0
  %1527 = vmatprep.mubr.bf16.mxu0 %v1239
  %1528 = vmatmul.mubr.bf16.gmra.mrb[0].mxu0 %v1238
  %v1529 = vpop.f32.mrb[0].mxu0
  %v1530 = vadd.f32 %v1277, %v1529
  %v1531 = vpop.f32.mrb[0].mxu0
  %v1532 = vpop.f32.mrb[0].mxu0
  %v1533 = vadd.f32 %v1277, %v1532
  %v1534 = vpop.f32.mrb[0].mxu0
  %1535 = vdwg.mxu0
  %1536 = vst [vmem:[%s9] sm:$0xff] %v1410
  %1537 = vst [vmem:[%s9 + $0x8] sm:$0xff] %v1413
  %1538 = vst [vmem:[%s9 + $0x10] sm:$0xff] %v1418
  %1539 = vst [vmem:[%s9 + $0x18] sm:$0xff] %v1421
  %1540 = vst [vmem:[%s9 + $0x20] sm:$0xff] %v1426
  %1541 = vst [vmem:[%s9 + $0x28] sm:$0xff] %v1429
  %1542 = vst [vmem:[%s9 + $0x30] sm:$0xff] %v1434
  %1543 = vst [vmem:[%s9 + $0x38] sm:$0xff] %v1437
  %1544 = vst [vmem:[%s9 + $0x40] sm:$0xff] %v1442
  %1545 = vst [vmem:[%s9 + $0x48] sm:$0xff] %v1445
  %1546 = vst [vmem:[%s9 + $0x50] sm:$0xff] %v1450
  %1547 = vst [vmem:[%s9 + $0x58] sm:$0xff] %v1453
  %1548 = vst [vmem:[%s9 + $0x60] sm:$0xff] %v1458
  %1549 = vst [vmem:[%s9 + $0x68] sm:$0xff] %v1461
  %1550 = vst [vmem:[%s9 + $0x70] sm:$0xff] %v1466
  %1551 = vst [vmem:[%s9 + $0x78] sm:$0xff] %v1469
  %1552 = vst [vmem:[%s9 + $0x80] sm:$0xff] %v1474
  %1553 = vst [vmem:[%s9 + $0x88] sm:$0xff] %v1477
  %1554 = vst [vmem:[%s9 + $0x90] sm:$0xff] %v1482
  %1555 = vst [vmem:[%s9 + $0x98] sm:$0xff] %v1485
  %1556 = vst [vmem:[%s9 + $0xa0] sm:$0xff] %v1490
  %1557 = vst [vmem:[%s9 + $0xa8] sm:$0xff] %v1493
  %1558 = vst [vmem:[%s9 + $0xb0] sm:$0xff] %v1498
  %1559 = vst [vmem:[%s9 + $0xb8] sm:$0xff] %v1501
  %1560 = vst [vmem:[%s9 + $0xc0] sm:$0xff] %v1506
  %1561 = vst [vmem:[%s9 + $0xc8] sm:$0xff] %v1509
  %1562 = vst [vmem:[%s9 + $0xd0] sm:$0xff] %v1514
  %1563 = vst [vmem:[%s9 + $0xd8] sm:$0xff] %v1517
  %1564 = vst [vmem:[%s9 + $0xe0] sm:$0xff] %v1522
  %1565 = vst [vmem:[%s9 + $0xe8] sm:$0xff] %v1525
  %1566 = vst [vmem:[%s9 + $0xf0] sm:$0xff] %v1530
  %1567 = vst [vmem:[%s9 + $0xf8] sm:$0xff] %v1533
  // Predicated region
  $region38: #{value_forward.1} parent=0 // pred_check
    _
  $region39: #{value_forward.1} parent=0 // pred_check_branch
    %1569 = sbr.rel (0) target = $region41
  $region40: #{value_forward.1} parent=0 // pred_region
    _
  $region41: #{value_forward.1} parent=0 // pred_fallthru
    _
  // Predicated region
  $region42: #{value_forward.1} parent=0 // pred_check
    _
  $region43: #{value_forward.1} parent=0 // pred_check_branch
    %1571 = sbr.rel (0) target = $region45
  $region44: #{value_forward.1} parent=0 // pred_region
    _
  $region45: #{value_forward.1} parent=0 // pred_fallthru
    _

</llo_original>
